<compile_context>
chip_gen: v5e
topology: v5e:2x2
jax: 0.10.0
libtpu: 0.0.40
codegen_flags: <defaults>
</compile_context>

<pallas_src>
from functools import partial

import numpy as np
import jax
import jax.numpy as jnp
from jax import lax
from jax.experimental import pallas as pl
from jax.experimental.pallas import tpu as pltpu


# ---------------------------------------------------------------------------
# Kernel
# ---------------------------------------------------------------------------
def gpsa_kernel(x_ref, wq_ref, wk_ref, wv_ref, wproj_ref, bproj_ref,
                pos_ref, sig_ref, o_ref,
                k_scr, v_scr, ctx_scr,
                *, num_heads, scale, q_tile):
    # x_ref:    (1, N, C)  full sequence of the current batch element
    # wq/wk/wv/wproj_ref: (C, C)  weights, pre-transposed for x @ W
    # bproj_ref:(1, C)
    # pos_ref:  (H, TQ, N) f32   precomputed softmax(pos_proj(rel_indices)) rows
    # sig_ref:  (H,) f32 in SMEM sigmoid(gating_param)
    # o_ref:    (1, TQ, C)
    # k_scr/v_scr: (N, C) VMEM   k / v projections cached per batch element
    # ctx_scr:  (TQ, C) VMEM     per-head context assembled by sliced stores
    qi = pl.program_id(1)
    N = x_ref.shape[1]
    C = x_ref.shape[2]
    D = C // num_heads
    cdt = x_ref.dtype  # keep MXU operands in the input dtype (bf16-ready)

    # ---- k / v projections: once per batch element (qi == 0), reused after.
    @pl.when(qi == 0)
    def _():
        xf = x_ref[0]                                                  # (N, C)
        k_scr[...] = jnp.dot(xf, wk_ref[...],
                             preferred_element_type=jnp.float32).astype(cdt)
        v_scr[...] = jnp.dot(xf, wv_ref[...],
                             preferred_element_type=jnp.float32).astype(cdt)

    # ---- q projection for this query tile only; fold scale into q.
    row0 = pl.multiple_of(qi * q_tile, 8)
    xq = x_ref[0, pl.ds(row0, q_tile), :]                              # (TQ, C)
    q = (jnp.dot(xq, wq_ref[...],
                 preferred_element_type=jnp.float32) * scale).astype(cdt)

    k = k_scr[...]                                                     # (N, C)
    v = v_scr[...]                                                     # (N, C)

    # ---- per-head gated attention (H is small; static unroll).
    for h in range(num_heads):
        qh = q[:, h * D:(h + 1) * D]                                   # (TQ, D)
        kh = k[:, h * D:(h + 1) * D]                                   # (N, D)
        vh = v[:, h * D:(h + 1) * D]                                   # (N, D)

        # content scores: transposed contraction, no explicit kh.T
        s = lax.dot_general(qh, kh, (((1,), (1,)), ((), ())),
                            preferred_element_type=jnp.float32)        # (TQ, N)
        s = s - jnp.max(s, axis=-1, keepdims=True)
        p = jnp.exp(s)
        patch = p * pl.reciprocal(jnp.sum(p, axis=-1, keepdims=True),
                                  approx=True)

        g = sig_ref[h]                                                 # scalar
        attn = (1.0 - g) * patch + g * pos_ref[h]                      # (TQ, N)
        # re-normalisation (attn /= attn.sum(-1)) as in the module
        attn = attn * pl.reciprocal(jnp.sum(attn, axis=-1, keepdims=True),
                                    approx=True)

        ctx_scr[:, h * D:(h + 1) * D] = jnp.dot(
            attn.astype(cdt), vh,
            preferred_element_type=jnp.float32).astype(cdt)

    # ---- output projection for this query tile.
    y = jnp.dot(ctx_scr[...], wproj_ref[...],
                preferred_element_type=jnp.float32)
    y = y + bproj_ref[...].astype(jnp.float32)
    o_ref[0] = y.astype(o_ref.dtype)


# ---------------------------------------------------------------------------
# Host-side helpers (parameter init / rel_indices, faithful to the module)
# ---------------------------------------------------------------------------
def _rel_indices(num_patches):
    img = int(num_patches ** 0.5)
    ind = np.arange(img).reshape(1, -1) - np.arange(img).reshape(-1, 1)
    indx = np.tile(ind, (img, img))
    indy = np.repeat(np.repeat(ind, img, axis=0), img, axis=1)
    indd = (indx ** 2 + indy ** 2).astype(np.float32)
    # NOTE: the provided module writes indd into all three channels.
    return np.stack([indd, indd, indd], axis=-1)                       # (N, N, 3)


def _pick_q_tile(n):
    if n % 128 == 0:
        return 128
    for t in (64, 32, 16, 8):      # small-N fallback (keeps >= 2 tiles if possible)
        if n % t == 0 and t < n:
            return t
    return n


def xavier_uniform(key, shape):
    fan_out, fan_in = shape        # PyTorch Linear weight layout (out, in)
    limit = (6.0 / (fan_in + fan_out)) ** 0.5
    return jax.random.uniform(key, shape, jnp.float32, -limit, limit)


def init_gpsa_params(key, dim, num_heads, locality_strength=1.0,
                     use_local_init=True):
    kqk, kv, kproj, kpos = jax.random.split(key, 4)
    w_qk = xavier_uniform(kqk, (2 * dim, dim))        # qkv_bias=False (default)
    w_v = xavier_uniform(kv, (dim, dim))
    w_proj = xavier_uniform(kproj, (dim, dim))
    b_proj = jnp.zeros((dim,), jnp.float32)
    w_pos = xavier_uniform(kpos, (num_heads, 3))
    b_pos = jnp.zeros((num_heads,), jnp.float32)
    gating = jnp.ones((num_heads,), jnp.float32)

    if use_local_init:
        w_v = jnp.eye(dim, dtype=jnp.float32)         # v.weight <- I
        wp = np.array(w_pos)
        locality_distance = 1
        ks = int(num_heads ** 0.5)
        center = (ks - 1) / 2 if ks % 2 == 0 else ks // 2
        for h1 in range(ks):
            for h2 in range(ks):
                position = h1 + ks * h2
                wp[position, 2] = -1
                wp[position, 1] = 2 * (h1 - center) * locality_distance
                wp[position, 0] = 2 * (h2 - center) * locality_distance
                wp *= locality_strength                # quirk kept from module
        w_pos = jnp.asarray(wp, jnp.float32)

    return dict(w_qk=w_qk, w_v=w_v, w_proj=w_proj, b_proj=b_proj,
                w_pos=w_pos, b_pos=b_pos, gating=gating)


# ---------------------------------------------------------------------------
# Wrapper
# ---------------------------------------------------------------------------
def gpsa_forward(x, w_qk, w_v, w_proj, b_proj, w_pos, b_pos, gating,
                 num_heads, qk_scale=None):
    """x: (B, N, C). Weights in PyTorch Linear layout (out_features, in_features)."""
    B, N, C = x.shape
    H = num_heads
    assert C % H == 0, "dim must be divisible by num_heads"
    D = C // H
    scale = qk_scale if qk_scale is not None else D ** (-0.5)

    # --- input-independent positional branch, computed once (not per batch):
    rel = jnp.asarray(_rel_indices(N))                                  # (N, N, 3)
    pos_score = jnp.einsum('nmt,ht->hnm', rel, w_pos) + b_pos[:, None, None]
    pos_attn = jax.nn.softmax(pos_score.astype(jnp.float32), axis=-1)   # (H, N, N)
    sig = jax.nn.sigmoid(gating).astype(jnp.float32)                    # (H,)

    # --- layout plumbing: transpose / split weights once so the kernel does x @ W
    w_q_t = jnp.asarray(w_qk)[:C].T                                     # (C, C)
    w_k_t = jnp.asarray(w_qk)[C:].T                                     # (C, C)
    w_v_t = jnp.asarray(w_v).T
    w_proj_t = jnp.asarray(w_proj).T
    b_proj_2d = jnp.asarray(b_proj).reshape(1, C)

    tq = _pick_q_tile(N)
    assert N % tq == 0
    nq = N // tq

    kernel = partial(gpsa_kernel, num_heads=H, scale=float(scale), q_tile=tq)

    return pl.pallas_call(
        kernel,
        out_shape=jax.ShapeDtypeStruct((B, N, C), x.dtype),
        grid_spec=pltpu.PrefetchScalarGridSpec(
            num_scalar_prefetch=0,
            grid=(B, nq),
            in_specs=[
                pl.BlockSpec((1, N, C), lambda b, q: (b, 0, 0)),   # x (full seq)
                pl.BlockSpec((C, C), lambda b, q: (0, 0)),         # W_q
                pl.BlockSpec((C, C), lambda b, q: (0, 0)),         # W_k
                pl.BlockSpec((C, C), lambda b, q: (0, 0)),         # W_v
                pl.BlockSpec((C, C), lambda b, q: (0, 0)),         # W_proj
                pl.BlockSpec((1, C), lambda b, q: (0, 0)),         # b_proj
                pl.BlockSpec((H, tq, N), lambda b, q: (0, q, 0)),  # pos_attn rows
                pl.BlockSpec(memory_space=pltpu.MemorySpace.SMEM), # sigmoid(gating)
            ],
            out_specs=pl.BlockSpec((1, tq, C), lambda b, q: (b, q, 0)),
            scratch_shapes=[
                pltpu.VMEM((N, C), x.dtype),     # k cache (per batch element)
                pltpu.VMEM((N, C), x.dtype),     # v cache
                pltpu.VMEM((tq, C), x.dtype),    # per-tile context
            ],
        ),
        compiler_params=pltpu.CompilerParams(
            # q-tile axis is "arbitrary" because the k/v cache is filled at qi==0
            # and reused for qi>0 of the same batch element.
            dimension_semantics=("parallel", "arbitrary"),
            vmem_limit_bytes=64 * 1024 * 1024,
        ),
    )(x, w_q_t, w_k_t, w_v_t, w_proj_t, b_proj_2d, pos_attn, sig)


# ---------------------------------------------------------------------------
# Pure-JAX reference (mirrors the intended PyTorch GPSA forward)
# ---------------------------------------------------------------------------
def gpsa_reference(x, w_qk, w_v, w_proj, b_proj, w_pos, b_pos, gating,
                   num_heads, qk_scale=None):
    B, N, C = x.shape
    H = num_heads
    D = C // H
    scale = qk_scale if qk_scale is not None else D ** (-0.5)
    rel = jnp.asarray(_rel_indices(N))

    qk = jnp.einsum('bnc,oc->bno', x, w_qk).reshape(B, N, 2, H, D)
    qk = qk.transpose(2, 0, 3, 1, 4)
    q, k = qk[0], qk[1]                                                 # (B,H,N,D)
    v = jnp.einsum('bnc,oc->bno', x, w_v).reshape(B, N, H, D).transpose(0, 2, 1, 3)

    patch = jax.nn.softmax(jnp.einsum('bhnd,bhmd->bhnm', q, k) * scale, axis=-1)
    pos = jax.nn.softmax(jnp.einsum('nmt,ht->hnm', rel, w_pos)
                         + b_pos[:, None, None], axis=-1)               # (H,N,N)
    g = jax.nn.sigmoid(gating).reshape(1, H, 1, 1)
    attn = (1.0 - g) * patch + g * pos[None]
    attn = attn / attn.sum(axis=-1, keepdims=True)

    y = jnp.einsum('bhnm,bhmd->bhnd', attn, v).transpose(0, 2, 1, 3).reshape(B, N, C)
    return jnp.einsum('bnc,oc->bno', y, w_proj) + b_proj


# ---------------------------------------------------------------------------
if __name__ == "__main__":
    # N must be a perfect square (rel_indices); num_heads' sqrt used by local_init.
    B, N, C, H = 2, 16, 32, 4

    key = jax.random.PRNGKey(0)
    kx, kp = jax.random.split(key)
    x = jax.random.normal(kx, (B, N, C), jnp.float32)
    params = init_gpsa_params(kp, C, H)

    out = gpsa_forward(x, num_heads=H, **params)
    out = jax.block_until_ready(out)

    ref = gpsa_reference(x, num_heads=H, **params)
    assert out.shape == (B, N, C)
    err = jnp.max(jnp.abs(out - ref))
    # tolerance loosened vs 1e-4 because the softmax/renorm denominators use
    # the EUP approximate reciprocal (pl.reciprocal(approx=True)).
    assert jnp.allclose(out, ref, atol=5e-3, rtol=5e-3), f"max err {err}"

    print("KERNEL_OK")
</pallas_src>

<mosaic_0001>
module attributes {stable_mosaic.version = 11 : i64} {
  func.func @gpsa_kernel(%arg0: i32, %arg1: i32, %arg2: memref<1x16x32xf32, #tpu.memory_space<vmem>>, %arg3: memref<32x32xf32, #tpu.memory_space<vmem>>, %arg4: memref<32x32xf32, #tpu.memory_space<vmem>>, %arg5: memref<32x32xf32, #tpu.memory_space<vmem>>, %arg6: memref<32x32xf32, #tpu.memory_space<vmem>>, %arg7: memref<1x32xf32, #tpu.memory_space<vmem>>, %arg8: memref<4x8x16xf32, #tpu.memory_space<vmem>>, %arg9: memref<4xf32, #tpu.memory_space<smem>>, %arg10: memref<1x8x32xf32, #tpu.memory_space<vmem>>, %arg11: memref<16x32xf32, #tpu.memory_space<vmem>>, %arg12: memref<16x32xf32, #tpu.memory_space<vmem>>, %arg13: memref<8x32xf32, #tpu.memory_space<vmem>>) attributes {dimension_semantics = [#tpu.dimension_semantics<parallel>, #tpu.dimension_semantics<arbitrary>], iteration_bounds = array<i64: 2, 2>, scalar_prefetch = 0 : i64, scratch_operands = 3 : i64, tpu.core_type = #tpu.core_type<tc>, window_params = [{transform_indices = @transform_0, window_bounds = array<i64: 1, 16, 32>}, {pipeline_mode = #tpu.pipeline_mode<synchronous>, transform_indices = @transform_1, window_bounds = array<i64: 32, 32>}, {pipeline_mode = #tpu.pipeline_mode<synchronous>, transform_indices = @transform_2, window_bounds = array<i64: 32, 32>}, {pipeline_mode = #tpu.pipeline_mode<synchronous>, transform_indices = @transform_3, window_bounds = array<i64: 32, 32>}, {pipeline_mode = #tpu.pipeline_mode<synchronous>, transform_indices = @transform_4, window_bounds = array<i64: 32, 32>}, {pipeline_mode = #tpu.pipeline_mode<synchronous>, transform_indices = @transform_5, window_bounds = array<i64: 1, 32>}, {transform_indices = @transform_6, window_bounds = array<i64: 4, 8, 16>}, {transform_indices = @transform_7, window_bounds = array<i64: 4>}, {transform_indices = @transform_8, window_bounds = array<i64: 1, 8, 32>}]} {
    %c0_i32 = arith.constant 0 : i32
    %0 = arith.cmpi eq, %arg1, %c0_i32 : i32
    %1 = arith.extui %0 : i1 to i32
    %c0_i32_0 = arith.constant 0 : i32
    %2 = arith.cmpi ne, %1, %c0_i32_0 : i32
    scf.if %2 {
      %c0_61 = arith.constant 0 : index
      %c0_62 = arith.constant 0 : index
      %c0_63 = arith.constant 0 : index
      %143 = vector.load %arg2[%c0_61, %c0_62, %c0_63] : memref<1x16x32xf32, #tpu.memory_space<vmem>>, vector<1x16x32xf32>
      %144 = vector.shape_cast %143 : vector<1x16x32xf32> to vector<16x32xf32>
      %c0_64 = arith.constant 0 : index
      %c0_65 = arith.constant 0 : index
      %145 = vector.load %arg4[%c0_64, %c0_65] : memref<32x32xf32, #tpu.memory_space<vmem>>, vector<32x32xf32>
      %cst_66 = arith.constant dense<0.000000e+00> : vector<16x32xf32>
      %146 = tpu.matmul %144, %145, %cst_66 {dimension_numbers = #tpu.dot_dimension_numbers<[1], [0], [0], [1], [0, 0, 1, 1], [], []>} : vector<16x32xf32>, vector<32x32xf32>, vector<16x32xf32> -> vector<16x32xf32>
      %c0_67 = arith.constant 0 : index
      %c0_68 = arith.constant 0 : index
      %147 = vector.load %arg11[%c0_67, %c0_68] : memref<16x32xf32, #tpu.memory_space<vmem>>, vector<16x32xf32>
      tpu.vector_store %arg11[%c0_67, %c0_68], %146 {strides = array<i32>} : memref<16x32xf32, #tpu.memory_space<vmem>>, vector<16x32xf32>,
      %c0_69 = arith.constant 0 : index
      %c0_70 = arith.constant 0 : index
      %148 = vector.load %arg5[%c0_69, %c0_70] : memref<32x32xf32, #tpu.memory_space<vmem>>, vector<32x32xf32>
      %cst_71 = arith.constant dense<0.000000e+00> : vector<16x32xf32>
      %149 = tpu.matmul %144, %148, %cst_71 {dimension_numbers = #tpu.dot_dimension_numbers<[1], [0], [0], [1], [0, 0, 1, 1], [], []>} : vector<16x32xf32>, vector<32x32xf32>, vector<16x32xf32> -> vector<16x32xf32>
      %c0_72 = arith.constant 0 : index
      %c0_73 = arith.constant 0 : index
      %150 = vector.load %arg12[%c0_72, %c0_73] : memref<16x32xf32, #tpu.memory_space<vmem>>, vector<16x32xf32>
      tpu.vector_store %arg12[%c0_72, %c0_73], %149 {strides = array<i32>} : memref<16x32xf32, #tpu.memory_space<vmem>>, vector<16x32xf32>,
    } else {
    }
    %c8_i32 = arith.constant 8 : i32
    %3 = arith.muli %arg1, %c8_i32 : i32
    %4 = tpu.assume_multiple %3, 8 : i32
    %c0 = arith.constant 0 : index
    %5 = arith.index_cast %4 : i32 to index
    %c0_1 = arith.constant 0 : index
    %6 = vector.load %arg2[%c0, %5, %c0_1] : memref<1x16x32xf32, #tpu.memory_space<vmem>>, vector<1x8x32xf32>
    %7 = vector.shape_cast %6 : vector<1x8x32xf32> to vector<8x32xf32>
    %c0_2 = arith.constant 0 : index
    %c0_3 = arith.constant 0 : index
    %8 = vector.load %arg3[%c0_2, %c0_3] : memref<32x32xf32, #tpu.memory_space<vmem>>, vector<32x32xf32>
    %cst = arith.constant dense<0.000000e+00> : vector<8x32xf32>
    %9 = tpu.matmul %7, %8, %cst {dimension_numbers = #tpu.dot_dimension_numbers<[1], [0], [0], [1], [0, 0, 1, 1], [], []>} : vector<8x32xf32>, vector<32x32xf32>, vector<8x32xf32> -> vector<8x32xf32>
    %cst_4 = arith.constant 0.353553385 : f32
    %10 = vector.broadcast %cst_4 : f32 to vector<8x32xf32>
    %11 = arith.mulf %9, %10 : vector<8x32xf32>
    %c0_5 = arith.constant 0 : index
    %c0_6 = arith.constant 0 : index
    %12 = vector.load %arg11[%c0_5, %c0_6] : memref<16x32xf32, #tpu.memory_space<vmem>>, vector<16x32xf32>
    %c0_7 = arith.constant 0 : index
    %c0_8 = arith.constant 0 : index
    %13 = vector.load %arg12[%c0_7, %c0_8] : memref<16x32xf32, #tpu.memory_space<vmem>>, vector<16x32xf32>
    %14 = vector.extract_strided_slice %11 {offsets = [0, 0], sizes = [8, 8], strides = [1, 1]} : vector<8x32xf32> to vector<8x8xf32>
    %15 = vector.extract_strided_slice %12 {offsets = [0, 0], sizes = [16, 8], strides = [1, 1]} : vector<16x32xf32> to vector<16x8xf32>
    %16 = vector.extract_strided_slice %13 {offsets = [0, 0], sizes = [16, 8], strides = [1, 1]} : vector<16x32xf32> to vector<16x8xf32>
    %cst_9 = arith.constant dense<0.000000e+00> : vector<8x16xf32>
    %17 = tpu.matmul %14, %15, %cst_9 {dimension_numbers = #tpu.dot_dimension_numbers<[1], [1], [0], [0], [0, 0, 1, 0], [], []>} : vector<8x8xf32>, vector<16x8xf32>, vector<8x16xf32> -> vector<8x16xf32>
    %cst_10 = arith.constant dense<0xFF800000> : vector<8xf32>
    %18 = vector.multi_reduction <maximumf>, %17, %cst_10 [1] : vector<8x16xf32> to vector<8xf32>
    %19 = vector.shape_cast %18 : vector<8xf32> to vector<8x1xf32>
    %20 = vector.broadcast %19 : vector<8x1xf32> to vector<8x16xf32>
    %21 = arith.subf %17, %20 : vector<8x16xf32>
    %22 = math.exp %21 : vector<8x16xf32>
    %cst_11 = arith.constant dense<0.000000e+00> : vector<8xf32>
    %23 = vector.multi_reduction <add>, %22, %cst_11 [1] : vector<8x16xf32> to vector<8xf32>
    %24 = vector.shape_cast %23 : vector<8xf32> to vector<8x1xf32>
    %25 = tpu.reciprocal %24 {approx = true} : vector<8x1xf32> -> vector<8x1xf32>
    %26 = vector.broadcast %25 : vector<8x1xf32> to vector<8x16xf32>
    %27 = arith.mulf %22, %26 : vector<8x16xf32>
    %c0_12 = arith.constant 0 : index
    %28 = memref.load %arg9[%c0_12] : memref<4xf32, #tpu.memory_space<smem>>
    %cst_13 = arith.constant 1.000000e+00 : f32
    %29 = arith.subf %cst_13, %28 : f32
    %30 = vector.broadcast %29 : f32 to vector<8x16xf32>
    %31 = arith.mulf %30, %27 : vector<8x16xf32>
    %c0_14 = arith.constant 0 : index
    %c0_15 = arith.constant 0 : index
    %c0_16 = arith.constant 0 : index
    %32 = vector.load %arg8[%c0_14, %c0_15, %c0_16] : memref<4x8x16xf32, #tpu.memory_space<vmem>>, vector<1x8x16xf32>
    %33 = vector.shape_cast %32 : vector<1x8x16xf32> to vector<8x16xf32>
    %34 = vector.broadcast %28 : f32 to vector<8x16xf32>
    %35 = arith.mulf %34, %33 : vector<8x16xf32>
    %36 = arith.addf %31, %35 : vector<8x16xf32>
    %cst_17 = arith.constant dense<0.000000e+00> : vector<8xf32>
    %37 = vector.multi_reduction <add>, %36, %cst_17 [1] : vector<8x16xf32> to vector<8xf32>
    %38 = vector.shape_cast %37 : vector<8xf32> to vector<8x1xf32>
    %39 = tpu.reciprocal %38 {approx = true} : vector<8x1xf32> -> vector<8x1xf32>
    %40 = vector.broadcast %39 : vector<8x1xf32> to vector<8x16xf32>
    %41 = arith.mulf %36, %40 : vector<8x16xf32>
    %cst_18 = arith.constant dense<0.000000e+00> : vector<8x8xf32>
    %42 = tpu.matmul %41, %16, %cst_18 {dimension_numbers = #tpu.dot_dimension_numbers<[1], [0], [0], [1], [0, 0, 1, 1], [], []>} : vector<8x16xf32>, vector<16x8xf32>, vector<8x8xf32> -> vector<8x8xf32>
    %c0_19 = arith.constant 0 : index
    %c0_20 = arith.constant 0 : index
    %43 = vector.load %arg13[%c0_19, %c0_20] : memref<8x32xf32, #tpu.memory_space<vmem>>, vector<8x8xf32>
    tpu.vector_store %arg13[%c0_19, %c0_20], %42 {strides = array<i32>} : memref<8x32xf32, #tpu.memory_space<vmem>>, vector<8x8xf32>,
    %44 = vector.extract_strided_slice %11 {offsets = [0, 8], sizes = [8, 8], strides = [1, 1]} : vector<8x32xf32> to vector<8x8xf32>
    %45 = vector.extract_strided_slice %12 {offsets = [0, 8], sizes = [16, 8], strides = [1, 1]} : vector<16x32xf32> to vector<16x8xf32>
    %46 = vector.extract_strided_slice %13 {offsets = [0, 8], sizes = [16, 8], strides = [1, 1]} : vector<16x32xf32> to vector<16x8xf32>
    %cst_21 = arith.constant dense<0.000000e+00> : vector<8x16xf32>
    %47 = tpu.matmul %44, %45, %cst_21 {dimension_numbers = #tpu.dot_dimension_numbers<[1], [1], [0], [0], [0, 0, 1, 0], [], []>} : vector<8x8xf32>, vector<16x8xf32>, vector<8x16xf32> -> vector<8x16xf32>
    %cst_22 = arith.constant dense<0xFF800000> : vector<8xf32>
    %48 = vector.multi_reduction <maximumf>, %47, %cst_22 [1] : vector<8x16xf32> to vector<8xf32>
    %49 = vector.shape_cast %48 : vector<8xf32> to vector<8x1xf32>
    %50 = vector.broadcast %49 : vector<8x1xf32> to vector<8x16xf32>
    %51 = arith.subf %47, %50 : vector<8x16xf32>
    %52 = math.exp %51 : vector<8x16xf32>
    %cst_23 = arith.constant dense<0.000000e+00> : vector<8xf32>
    %53 = vector.multi_reduction <add>, %52, %cst_23 [1] : vector<8x16xf32> to vector<8xf32>
    %54 = vector.shape_cast %53 : vector<8xf32> to vector<8x1xf32>
    %55 = tpu.reciprocal %54 {approx = true} : vector<8x1xf32> -> vector<8x1xf32>
    %56 = vector.broadcast %55 : vector<8x1xf32> to vector<8x16xf32>
    %57 = arith.mulf %52, %56 : vector<8x16xf32>
    %c1 = arith.constant 1 : index
    %58 = memref.load %arg9[%c1] : memref<4xf32, #tpu.memory_space<smem>>
    %cst_24 = arith.constant 1.000000e+00 : f32
    %59 = arith.subf %cst_24, %58 : f32
    %60 = vector.broadcast %59 : f32 to vector<8x16xf32>
    %61 = arith.mulf %60, %57 : vector<8x16xf32>
    %c1_25 = arith.constant 1 : index
    %c0_26 = arith.constant 0 : index
    %c0_27 = arith.constant 0 : index
    %62 = vector.load %arg8[%c1_25, %c0_26, %c0_27] : memref<4x8x16xf32, #tpu.memory_space<vmem>>, vector<1x8x16xf32>
    %63 = vector.shape_cast %62 : vector<1x8x16xf32> to vector<8x16xf32>
    %64 = vector.broadcast %58 : f32 to vector<8x16xf32>
    %65 = arith.mulf %64, %63 : vector<8x16xf32>
    %66 = arith.addf %61, %65 : vector<8x16xf32>
    %cst_28 = arith.constant dense<0.000000e+00> : vector<8xf32>
    %67 = vector.multi_reduction <add>, %66, %cst_28 [1] : vector<8x16xf32> to vector<8xf32>
    %68 = vector.shape_cast %67 : vector<8xf32> to vector<8x1xf32>
    %69 = tpu.reciprocal %68 {approx = true} : vector<8x1xf32> -> vector<8x1xf32>
    %70 = vector.broadcast %69 : vector<8x1xf32> to vector<8x16xf32>
    %71 = arith.mulf %66, %70 : vector<8x16xf32>
    %cst_29 = arith.constant dense<0.000000e+00> : vector<8x8xf32>
    %72 = tpu.matmul %71, %46, %cst_29 {dimension_numbers = #tpu.dot_dimension_numbers<[1], [0], [0], [1], [0, 0, 1, 1], [], []>} : vector<8x16xf32>, vector<16x8xf32>, vector<8x8xf32> -> vector<8x8xf32>
    %c0_30 = arith.constant 0 : index
    %c8 = arith.constant 8 : index
    %73 = vector.load %arg13[%c0_30, %c8] : memref<8x32xf32, #tpu.memory_space<vmem>>, vector<8x8xf32>
    tpu.vector_store %arg13[%c0_30, %c8], %72 {strides = array<i32>} : memref<8x32xf32, #tpu.memory_space<vmem>>, vector<8x8xf32>,
    %74 = vector.extract_strided_slice %11 {offsets = [0, 16], sizes = [8, 8], strides = [1, 1]} : vector<8x32xf32> to vector<8x8xf32>
    %75 = vector.extract_strided_slice %12 {offsets = [0, 16], sizes = [16, 8], strides = [1, 1]} : vector<16x32xf32> to vector<16x8xf32>
    %76 = vector.extract_strided_slice %13 {offsets = [0, 16], sizes = [16, 8], strides = [1, 1]} : vector<16x32xf32> to vector<16x8xf32>
    %cst_31 = arith.constant dense<0.000000e+00> : vector<8x16xf32>
    %77 = tpu.matmul %74, %75, %cst_31 {dimension_numbers = #tpu.dot_dimension_numbers<[1], [1], [0], [0], [0, 0, 1, 0], [], []>} : vector<8x8xf32>, vector<16x8xf32>, vector<8x16xf32> -> vector<8x16xf32>
    %cst_32 = arith.constant dense<0xFF800000> : vector<8xf32>
    %78 = vector.multi_reduction <maximumf>, %77, %cst_32 [1] : vector<8x16xf32> to vector<8xf32>
    %79 = vector.shape_cast %78 : vector<8xf32> to vector<8x1xf32>
    %80 = vector.broadcast %79 : vector<8x1xf32> to vector<8x16xf32>
    %81 = arith.subf %77, %80 : vector<8x16xf32>
    %82 = math.exp %81 : vector<8x16xf32>
    %cst_33 = arith.constant dense<0.000000e+00> : vector<8xf32>
    %83 = vector.multi_reduction <add>, %82, %cst_33 [1] : vector<8x16xf32> to vector<8xf32>
    %84 = vector.shape_cast %83 : vector<8xf32> to vector<8x1xf32>
    %85 = tpu.reciprocal %84 {approx = true} : vector<8x1xf32> -> vector<8x1xf32>
    %86 = vector.broadcast %85 : vector<8x1xf32> to vector<8x16xf32>
    %87 = arith.mulf %82, %86 : vector<8x16xf32>
    %c2 = arith.constant 2 : index
    %88 = memref.load %arg9[%c2] : memref<4xf32, #tpu.memory_space<smem>>
    %cst_34 = arith.constant 1.000000e+00 : f32
    %89 = arith.subf %cst_34, %88 : f32
    %90 = vector.broadcast %89 : f32 to vector<8x16xf32>
    %91 = arith.mulf %90, %87 : vector<8x16xf32>
    %c2_35 = arith.constant 2 : index
    %c0_36 = arith.constant 0 : index
    %c0_37 = arith.constant 0 : index
    %92 = vector.load %arg8[%c2_35, %c0_36, %c0_37] : memref<4x8x16xf32, #tpu.memory_space<vmem>>, vector<1x8x16xf32>
    %93 = vector.shape_cast %92 : vector<1x8x16xf32> to vector<8x16xf32>
    %94 = vector.broadcast %88 : f32 to vector<8x16xf32>
    %95 = arith.mulf %94, %93 : vector<8x16xf32>
    %96 = arith.addf %91, %95 : vector<8x16xf32>
    %cst_38 = arith.constant dense<0.000000e+00> : vector<8xf32>
    %97 = vector.multi_reduction <add>, %96, %cst_38 [1] : vector<8x16xf32> to vector<8xf32>
    %98 = vector.shape_cast %97 : vector<8xf32> to vector<8x1xf32>
    %99 = tpu.reciprocal %98 {approx = true} : vector<8x1xf32> -> vector<8x1xf32>
    %100 = vector.broadcast %99 : vector<8x1xf32> to vector<8x16xf32>
    %101 = arith.mulf %96, %100 : vector<8x16xf32>
    %cst_39 = arith.constant dense<0.000000e+00> : vector<8x8xf32>
    %102 = tpu.matmul %101, %76, %cst_39 {dimension_numbers = #tpu.dot_dimension_numbers<[1], [0], [0], [1], [0, 0, 1, 1], [], []>} : vector<8x16xf32>, vector<16x8xf32>, vector<8x8xf32> -> vector<8x8xf32>
    %c0_40 = arith.constant 0 : index
    %c16 = arith.constant 16 : index
    %103 = vector.load %arg13[%c0_40, %c16] : memref<8x32xf32, #tpu.memory_space<vmem>>, vector<8x8xf32>
    tpu.vector_store %arg13[%c0_40, %c16], %102 {strides = array<i32>} : memref<8x32xf32, #tpu.memory_space<vmem>>, vector<8x8xf32>,
    %104 = vector.extract_strided_slice %11 {offsets = [0, 24], sizes = [8, 8], strides = [1, 1]} : vector<8x32xf32> to vector<8x8xf32>
    %105 = vector.extract_strided_slice %12 {offsets = [0, 24], sizes = [16, 8], strides = [1, 1]} : vector<16x32xf32> to vector<16x8xf32>
    %106 = vector.extract_strided_slice %13 {offsets = [0, 24], sizes = [16, 8], strides = [1, 1]} : vector<16x32xf32> to vector<16x8xf32>
    %cst_41 = arith.constant dense<0.000000e+00> : vector<8x16xf32>
    %107 = tpu.matmul %104, %105, %cst_41 {dimension_numbers = #tpu.dot_dimension_numbers<[1], [1], [0], [0], [0, 0, 1, 0], [], []>} : vector<8x8xf32>, vector<16x8xf32>, vector<8x16xf32> -> vector<8x16xf32>
    %cst_42 = arith.constant dense<0xFF800000> : vector<8xf32>
    %108 = vector.multi_reduction <maximumf>, %107, %cst_42 [1] : vector<8x16xf32> to vector<8xf32>
    %109 = vector.shape_cast %108 : vector<8xf32> to vector<8x1xf32>
    %110 = vector.broadcast %109 : vector<8x1xf32> to vector<8x16xf32>
    %111 = arith.subf %107, %110 : vector<8x16xf32>
    %112 = math.exp %111 : vector<8x16xf32>
    %cst_43 = arith.constant dense<0.000000e+00> : vector<8xf32>
    %113 = vector.multi_reduction <add>, %112, %cst_43 [1] : vector<8x16xf32> to vector<8xf32>
    %114 = vector.shape_cast %113 : vector<8xf32> to vector<8x1xf32>
    %115 = tpu.reciprocal %114 {approx = true} : vector<8x1xf32> -> vector<8x1xf32>
    %116 = vector.broadcast %115 : vector<8x1xf32> to vector<8x16xf32>
    %117 = arith.mulf %112, %116 : vector<8x16xf32>
    %c3 = arith.constant 3 : index
    %118 = memref.load %arg9[%c3] : memref<4xf32, #tpu.memory_space<smem>>
    %cst_44 = arith.constant 1.000000e+00 : f32
    %119 = arith.subf %cst_44, %118 : f32
    %120 = vector.broadcast %119 : f32 to vector<8x16xf32>
    %121 = arith.mulf %120, %117 : vector<8x16xf32>
    %c3_45 = arith.constant 3 : index
    %c0_46 = arith.constant 0 : index
    %c0_47 = arith.constant 0 : index
    %122 = vector.load %arg8[%c3_45, %c0_46, %c0_47] : memref<4x8x16xf32, #tpu.memory_space<vmem>>, vector<1x8x16xf32>
    %123 = vector.shape_cast %122 : vector<1x8x16xf32> to vector<8x16xf32>
    %124 = vector.broadcast %118 : f32 to vector<8x16xf32>
    %125 = arith.mulf %124, %123 : vector<8x16xf32>
    %126 = arith.addf %121, %125 : vector<8x16xf32>
    %cst_48 = arith.constant dense<0.000000e+00> : vector<8xf32>
    %127 = vector.multi_reduction <add>, %126, %cst_48 [1] : vector<8x16xf32> to vector<8xf32>
    %128 = vector.shape_cast %127 : vector<8xf32> to vector<8x1xf32>
    %129 = tpu.reciprocal %128 {approx = true} : vector<8x1xf32> -> vector<8x1xf32>
    %130 = vector.broadcast %129 : vector<8x1xf32> to vector<8x16xf32>
    %131 = arith.mulf %126, %130 : vector<8x16xf32>
    %cst_49 = arith.constant dense<0.000000e+00> : vector<8x8xf32>
    %132 = tpu.matmul %131, %106, %cst_49 {dimension_numbers = #tpu.dot_dimension_numbers<[1], [0], [0], [1], [0, 0, 1, 1], [], []>} : vector<8x16xf32>, vector<16x8xf32>, vector<8x8xf32> -> vector<8x8xf32>
    %c0_50 = arith.constant 0 : index
    %c24 = arith.constant 24 : index
    %133 = vector.load %arg13[%c0_50, %c24] : memref<8x32xf32, #tpu.memory_space<vmem>>, vector<8x8xf32>
    tpu.vector_store %arg13[%c0_50, %c24], %132 {strides = array<i32>} : memref<8x32xf32, #tpu.memory_space<vmem>>, vector<8x8xf32>,
    %c0_51 = arith.constant 0 : index
    %c0_52 = arith.constant 0 : index
    %134 = vector.load %arg13[%c0_51, %c0_52] : memref<8x32xf32, #tpu.memory_space<vmem>>, vector<8x32xf32>
    %c0_53 = arith.constant 0 : index
    %c0_54 = arith.constant 0 : index
    %135 = vector.load %arg6[%c0_53, %c0_54] : memref<32x32xf32, #tpu.memory_space<vmem>>, vector<32x32xf32>
    %cst_55 = arith.constant dense<0.000000e+00> : vector<8x32xf32>
    %136 = tpu.matmul %134, %135, %cst_55 {dimension_numbers = #tpu.dot_dimension_numbers<[1], [0], [0], [1], [0, 0, 1, 1], [], []>} : vector<8x32xf32>, vector<32x32xf32>, vector<8x32xf32> -> vector<8x32xf32>
    %c0_56 = arith.constant 0 : index
    %c0_57 = arith.constant 0 : index
    %137 = vector.load %arg7[%c0_56, %c0_57] : memref<1x32xf32, #tpu.memory_space<vmem>>, vector<1x32xf32>
    %138 = vector.broadcast %137 : vector<1x32xf32> to vector<8x32xf32>
    %139 = arith.addf %136, %138 : vector<8x32xf32>
    %c0_58 = arith.constant 0 : index
    %c0_59 = arith.constant 0 : index
    %c0_60 = arith.constant 0 : index
    %140 = vector.load %arg10[%c0_58, %c0_59, %c0_60] : memref<1x8x32xf32, #tpu.memory_space<vmem>>, vector<1x8x32xf32>
    %141 = vector.shape_cast %140 : vector<1x8x32xf32> to vector<8x32xf32>
    %142 = vector.shape_cast %139 : vector<8x32xf32> to vector<1x8x32xf32>
    tpu.vector_store %arg10[%c0_58, %c0_59, %c0_60], %142 {strides = array<i32>} : memref<1x8x32xf32, #tpu.memory_space<vmem>>, vector<1x8x32xf32>,
    return
  }
  func.func @transform_0(%arg0: i32, %arg1: i32) -> (i32, i32, i32) {
    %c0_i32 = arith.constant 0 : i32
    %c0_i32_0 = arith.constant 0 : i32
    %c0_i32_1 = arith.constant 0 : i32
    return %arg0, %c0_i32, %c0_i32_0 : i32, i32, i32
  }
  func.func @transform_1(%arg0: i32, %arg1: i32) -> (i32, i32) {
    %c0_i32 = arith.constant 0 : i32
    %c0_i32_0 = arith.constant 0 : i32
    %c0_i32_1 = arith.constant 0 : i32
    return %c0_i32, %c0_i32_0 : i32, i32
  }
  func.func @transform_2(%arg0: i32, %arg1: i32) -> (i32, i32) {
    %c0_i32 = arith.constant 0 : i32
    %c0_i32_0 = arith.constant 0 : i32
    %c0_i32_1 = arith.constant 0 : i32
    return %c0_i32, %c0_i32_0 : i32, i32
  }
  func.func @transform_3(%arg0: i32, %arg1: i32) -> (i32, i32) {
    %c0_i32 = arith.constant 0 : i32
    %c0_i32_0 = arith.constant 0 : i32
    %c0_i32_1 = arith.constant 0 : i32
    return %c0_i32, %c0_i32_0 : i32, i32
  }
  func.func @transform_4(%arg0: i32, %arg1: i32) -> (i32, i32) {
    %c0_i32 = arith.constant 0 : i32
    %c0_i32_0 = arith.constant 0 : i32
    %c0_i32_1 = arith.constant 0 : i32
    return %c0_i32, %c0_i32_0 : i32, i32
  }
  func.func @transform_5(%arg0: i32, %arg1: i32) -> (i32, i32) {
    %c0_i32 = arith.constant 0 : i32
    %c0_i32_0 = arith.constant 0 : i32
    %c0_i32_1 = arith.constant 0 : i32
    return %c0_i32, %c0_i32_0 : i32, i32
  }
  func.func @transform_6(%arg0: i32, %arg1: i32) -> (i32, i32, i32) {
    %c0_i32 = arith.constant 0 : i32
    %c0_i32_0 = arith.constant 0 : i32
    %c0_i32_1 = arith.constant 0 : i32
    return %c0_i32, %arg1, %c0_i32_0 : i32, i32, i32
  }
  func.func @transform_7(%arg0: i32, %arg1: i32) -> i32 {
    %c0_i32 = arith.constant 0 : i32
    %c0_i32_0 = arith.constant 0 : i32
    return %c0_i32 : i32
  }
  func.func @transform_8(%arg0: i32, %arg1: i32) -> (i32, i32, i32) {
    %c0_i32 = arith.constant 0 : i32
    %c0_i32_0 = arith.constant 0 : i32
    return %arg0, %arg1, %c0_i32 : i32, i32, i32
  }
}

</mosaic_0001>

<llo_original>
// kernel: tpu_custom_call.1
$region0: #{tpu_custom_call.1}
  #allocation0 [shape = 'u32[]', space=smem, size = 0x4, offset = 0x4, fixed_abs, tag = 'smem constant byte address 0x4 - core index']
  #allocation1 [shape = 'u32[72,128]{1,0:T(1,128)}', space=vmem, size = 0x9000, scoped, tag = 'internal scratch']
  #allocation2 [shape = 'f32[16,32]{1,0:T(8,128)}', space=vmem, size = 0x2000, scoped, tag = 'scratch operand']
  #allocation3 [shape = 'f32[16,32]{1,0:T(8,128)}', space=vmem, size = 0x2000, scoped, tag = 'scratch operand']
  #allocation4 [shape = 'f32[8,32]{1,0:T(8,128)}', space=vmem, size = 0x1000, scoped, tag = 'scratch operand']
  %s0 = inlined_call_operand.hbm [shape: f32[2,16,32], index: 0, kind: input, shape index: {}]
  %s1 = inlined_call_operand.hbm [shape: f32[32,32], index: 1, kind: input, shape index: {}]
  %s2 = inlined_call_operand.hbm [shape: f32[32,32], index: 2, kind: input, shape index: {}]
  %s3 = inlined_call_operand.hbm [shape: f32[32,32], index: 3, kind: input, shape index: {}]
  %s4 = inlined_call_operand.hbm [shape: f32[32,32], index: 4, kind: input, shape index: {}]
  %s5 = inlined_call_operand.vmem [shape: f32[1,32], index: 5, kind: input, shape index: {}]
  %s6 = inlined_call_operand.hbm [shape: f32[4,16,16], index: 6, kind: input, shape index: {}]
  %s7 = inlined_call_operand.vmem [shape: f32[4], index: 7, kind: input, shape index: {}]
  %s8 = inlined_call_operand.hbm [shape: f32[2,16,32], index: 8, kind: output, shape index: {}]
  %s9 = sld [smem:[#allocation0]]
  $region97: #{tpu_custom_call.1} parent=0
    _
  %s11 = ssub.s32 1, %s9
  %s12 = scalar_select 0, %s11, %s9
  $region1: #{tpu_custom_call.1} parent=0
    #allocation5 [shape = 'u8[16384]{0}', space=vmem, size = 0x4000, scoped, tag = 'input window, operand 0']
    #allocation6 [shape = 's32[2]{0}', space=sflag, size = 0x8, scoped, tag = 'scoped memory for tpu_custom_call.1']
    #allocation7 [shape = 's32[2]{0}', space=sflag, size = 0x8, scoped, tag = 'scoped memory for tpu_custom_call.1']
    #allocation8 [shape = 's32[2]{0}', space=sflag, size = 0x8, scoped, tag = 'scoped memory for tpu_custom_call.1']
    #allocation9 [shape = 'u8[16384]{0}', space=vmem, size = 0x4000, scoped, tag = 'input window, operand 1, single buffered']
    #allocation10 [shape = 's32[1]{0}', space=sflag, size = 0x4, scoped, tag = 'scoped memory for tpu_custom_call.1']
    #allocation11 [shape = 'u8[16384]{0}', space=vmem, size = 0x4000, scoped, tag = 'input window, operand 2, single buffered']
    #allocation12 [shape = 'u8[16384]{0}', space=vmem, size = 0x4000, scoped, tag = 'input window, operand 3, single buffered']
    #allocation13 [shape = 's32[1]{0}', space=sflag, size = 0x4, scoped, tag = 'scoped memory for tpu_custom_call.1']
    #allocation14 [shape = 'u8[16384]{0}', space=vmem, size = 0x4000, scoped, tag = 'input window, operand 4, single buffered']
    #allocation15 [shape = 'u8[32768]{0}', space=vmem, size = 0x8000, scoped, tag = 'input window, operand 6']
    #allocation16 [shape = 's32[2]{0}', space=sflag, size = 0x8, scoped, tag = 'scoped memory for tpu_custom_call.1']
    #allocation17 [shape = 'u8[512]{0}', space=smem, size = 0x200, scoped, tag = 'input window, operand 7, single buffered']
    #allocation18 [shape = 'u8[8192]{0}', space=vmem, size = 0x2000, scoped, tag = 'output window, operand 0']
    %13 = vsyncpa [#allocation6], 0
    %s14 = scalar_lea.sflag [#allocation6], 1
    %15 = vsyncpa %s14, 0
    %16 = vsyncpa [#allocation10], 0
    %17 = vsyncpa [#allocation13], 0
    %18 = vsyncpa [#allocation16], 0
    %s19 = scalar_lea.sflag [#allocation16], 1
    %20 = vsyncpa %s19, 0
    %21 = vsyncpa [#allocation8], 0
    %22 = vsyncpa [#allocation7], 0
    %s23 = scalar_lea.sflag [#allocation7], 1
    %24 = vsyncpa %s23, 0
    loop: start=0, step=1, limit=6
    $region2: #{tpu_custom_call.1} parent=1 // loop_pre_header
      _
    $region3: #{tpu_custom_call.1} parent=1 // loop_header
      %s26 = sphi 0, %s30
      %p27 = scmp.ge.s32.totalorder %s26, 6
      %s33 = sphi 0, %s45
      %s34 = sphi 0, %s41
      %s35 = sphi 0, %s33
      %s36 = sphi 0, %s34
      %s37 = sphi 0, %s35
      %s38 = sphi 0, %s36
      %s48 = sphi 0, %s50
      %s51 = sphi 0, %s48
      %s52 = sphi 0, %s51
      %s68 = sphi 0, %s52
      %s72 = sphi 0, %s72
      %s74 = sphi 0, %s72
      %s75 = sphi 0, %s74
      %s89 = sphi 0, %s75
      %s93 = sphi 0, %s93
      %s95 = sphi 0, %s93
      %s96 = sphi 0, %s95
      %s110 = sphi 0, %s96
      %s114 = sphi 0, %s114
      %s116 = sphi 0, %s114
      %s117 = sphi 0, %s116
      %s131 = sphi 0, %s117
      %s135 = sphi 0, %s135
      %s137 = sphi 0, %s135
      %s138 = sphi 0, %s137
      %s152 = sphi 0, %s138
      %s156 = sphi 0, %s156
      %s158 = sphi 0, %s156
      %s159 = sphi 0, %s158
      %s173 = sphi 0, %s159
      %s179 = sphi 0, %s181
      %s182 = sphi 0, %s179
      %s183 = sphi 0, %s182
      %s199 = sphi 0, %s183
      %s203 = sphi 0, %s203
      %s205 = sphi 0, %s203
      %s206 = sphi 0, %s205
      %s220 = sphi 0, %s206
      %s228 = sphi 0, %s230
      %s231 = sphi 0, %s228
      %s232 = sphi 0, %s231
      %s248 = sphi 0, %s232
    $region4: #{tpu_custom_call.1} parent=1 // loop_header_branch
      %29 = sbr.rel (%p27) target = $region8
    $region5: #{tpu_custom_call.1} parent=1 // loop_body
      %s31 = ssub.s32 %s26, 1
      %s32 = ssub.s32 %s26, 2
      %s39 = sadd.s32 1, %s34
      %p40 = scmp.ge.s32.totalorder %s39, 2
      %s41 = scalar_select %p40, 0, %s39
      %s42 = sadd.s32 1, %s33
      %s43 = scalar_select %p40, %s42, %s33
      %p44 = scmp.ge.s32.totalorder %s43, 2
      %s45 = scalar_select %p44, 0, %s43
      %s46 = ssub.s32 %s33, %s45
      %p47 = scmp.eq.s32.totalorder %s46, 0
      %s49 = sadd.s32 %s48, 1
      %s50 = scalar_select %p47, %s48, %s49
      %p53 = pneg %p47
      %p54 = scmp.eq.s32.totalorder %s26, 3
      %p55 = por %p53, %p54
      %p56 = scmp.ne.s32.totalorder %s48, %s51
      %p57 = scmp.eq.s32.totalorder %s26, 0
      %p58 = por %p56, %p57
      %p59 = scmp.ne.s32.totalorder %s48, %s51
      %p60 = scmp.eq.s32.totalorder %s31, 3
      %p61 = por %p59, %p60
      %p62 = scmp.ne.s32.totalorder %s51, %s52
      %p63 = scmp.eq.s32.totalorder %s31, 0
      %p64 = por %p62, %p63
      %p65 = scmp.ne.s32.totalorder %s51, %s52
      %p66 = scmp.eq.s32.totalorder %s32, 3
      %p67 = por %p65, %p66
      %p69 = scmp.ne.s32.totalorder %s52, %s68
      %p70 = scmp.eq.s32.totalorder %s32, 0
      %p71 = por %p69, %p70
      %s73 = sadd.s32 %s72, 1
      %p76 = scmp.eq.s32.totalorder %s26, 3
      %p77 = scmp.ne.s32.totalorder %s72, %s74
      %p78 = scmp.eq.s32.totalorder %s26, 0
      %p79 = por %p77, %p78
      %p80 = scmp.ne.s32.totalorder %s72, %s74
      %p81 = scmp.eq.s32.totalorder %s31, 3
      %p82 = por %p80, %p81
      %p83 = scmp.ne.s32.totalorder %s74, %s75
      %p84 = scmp.eq.s32.totalorder %s31, 0
      %p85 = por %p83, %p84
      %p86 = scmp.ne.s32.totalorder %s74, %s75
      %p87 = scmp.eq.s32.totalorder %s32, 3
      %p88 = por %p86, %p87
      %p90 = scmp.ne.s32.totalorder %s75, %s89
      %p91 = scmp.eq.s32.totalorder %s32, 0
      %p92 = por %p90, %p91
      %s94 = sadd.s32 %s93, 1
      %p97 = scmp.eq.s32.totalorder %s26, 3
      %p98 = scmp.ne.s32.totalorder %s93, %s95
      %p99 = scmp.eq.s32.totalorder %s26, 0
      %p100 = por %p98, %p99
      %p101 = scmp.ne.s32.totalorder %s93, %s95
      %p102 = scmp.eq.s32.totalorder %s31, 3
      %p103 = por %p101, %p102
      %p104 = scmp.ne.s32.totalorder %s95, %s96
      %p105 = scmp.eq.s32.totalorder %s31, 0
      %p106 = por %p104, %p105
      %p107 = scmp.ne.s32.totalorder %s95, %s96
      %p108 = scmp.eq.s32.totalorder %s32, 3
      %p109 = por %p107, %p108
      %p111 = scmp.ne.s32.totalorder %s96, %s110
      %p112 = scmp.eq.s32.totalorder %s32, 0
      %p113 = por %p111, %p112
      %s115 = sadd.s32 %s114, 1
      %p118 = scmp.eq.s32.totalorder %s26, 3
      %p119 = scmp.ne.s32.totalorder %s114, %s116
      %p120 = scmp.eq.s32.totalorder %s26, 0
      %p121 = por %p119, %p120
      %p122 = scmp.ne.s32.totalorder %s114, %s116
      %p123 = scmp.eq.s32.totalorder %s31, 3
      %p124 = por %p122, %p123
      %p125 = scmp.ne.s32.totalorder %s116, %s117
      %p126 = scmp.eq.s32.totalorder %s31, 0
      %p127 = por %p125, %p126
      %p128 = scmp.ne.s32.totalorder %s116, %s117
      %p129 = scmp.eq.s32.totalorder %s32, 3
      %p130 = por %p128, %p129
      %p132 = scmp.ne.s32.totalorder %s117, %s131
      %p133 = scmp.eq.s32.totalorder %s32, 0
      %p134 = por %p132, %p133
      %s136 = sadd.s32 %s135, 1
      %p139 = scmp.eq.s32.totalorder %s26, 3
      %p140 = scmp.ne.s32.totalorder %s135, %s137
      %p141 = scmp.eq.s32.totalorder %s26, 0
      %p142 = por %p140, %p141
      %p143 = scmp.ne.s32.totalorder %s135, %s137
      %p144 = scmp.eq.s32.totalorder %s31, 3
      %p145 = por %p143, %p144
      %p146 = scmp.ne.s32.totalorder %s137, %s138
      %p147 = scmp.eq.s32.totalorder %s31, 0
      %p148 = por %p146, %p147
      %p149 = scmp.ne.s32.totalorder %s137, %s138
      %p150 = scmp.eq.s32.totalorder %s32, 3
      %p151 = por %p149, %p150
      %p153 = scmp.ne.s32.totalorder %s138, %s152
      %p154 = scmp.eq.s32.totalorder %s32, 0
      %p155 = por %p153, %p154
      %s157 = sadd.s32 %s156, 1
      %p160 = scmp.eq.s32.totalorder %s26, 3
      %p161 = scmp.ne.s32.totalorder %s156, %s158
      %p162 = scmp.eq.s32.totalorder %s26, 0
      %p163 = por %p161, %p162
      %p164 = scmp.ne.s32.totalorder %s156, %s158
      %p165 = scmp.eq.s32.totalorder %s31, 3
      %p166 = por %p164, %p165
      %p167 = scmp.ne.s32.totalorder %s158, %s159
      %p168 = scmp.eq.s32.totalorder %s31, 0
      %p169 = por %p167, %p168
      %p170 = scmp.ne.s32.totalorder %s158, %s159
      %p171 = scmp.eq.s32.totalorder %s32, 3
      %p172 = por %p170, %p171
      %p174 = scmp.ne.s32.totalorder %s159, %s173
      %p175 = scmp.eq.s32.totalorder %s32, 0
      %p176 = por %p174, %p175
      %s177 = ssub.s32 %s34, %s41
      %p178 = scmp.eq.s32.totalorder %s177, 0
      %s180 = sadd.s32 %s179, 1
      %s181 = scalar_select %p178, %s179, %s180
      %p184 = pneg %p178
      %p185 = scmp.eq.s32.totalorder %s26, 3
      %p186 = por %p184, %p185
      %p187 = scmp.ne.s32.totalorder %s179, %s182
      %p188 = scmp.eq.s32.totalorder %s26, 0
      %p189 = por %p187, %p188
      %p190 = scmp.ne.s32.totalorder %s179, %s182
      %p191 = scmp.eq.s32.totalorder %s31, 3
      %p192 = por %p190, %p191
      %p193 = scmp.ne.s32.totalorder %s182, %s183
      %p194 = scmp.eq.s32.totalorder %s31, 0
      %p195 = por %p193, %p194
      %p196 = scmp.ne.s32.totalorder %s182, %s183
      %p197 = scmp.eq.s32.totalorder %s32, 3
      %p198 = por %p196, %p197
      %p200 = scmp.ne.s32.totalorder %s183, %s199
      %p201 = scmp.eq.s32.totalorder %s32, 0
      %p202 = por %p200, %p201
      %s204 = sadd.s32 %s203, 1
      %p207 = scmp.eq.s32.totalorder %s26, 3
      %p208 = scmp.ne.s32.totalorder %s203, %s205
      %p209 = scmp.eq.s32.totalorder %s26, 0
      %p210 = por %p208, %p209
      %p211 = scmp.ne.s32.totalorder %s203, %s205
      %p212 = scmp.eq.s32.totalorder %s31, 3
      %p213 = por %p211, %p212
      %p214 = scmp.ne.s32.totalorder %s205, %s206
      %p215 = scmp.eq.s32.totalorder %s31, 0
      %p216 = por %p214, %p215
      %p217 = scmp.ne.s32.totalorder %s205, %s206
      %p218 = scmp.eq.s32.totalorder %s32, 3
      %p219 = por %p217, %p218
      %p221 = scmp.ne.s32.totalorder %s206, %s220
      %p222 = scmp.eq.s32.totalorder %s32, 0
      %p223 = por %p221, %p222
      %s224 = ssub.s32 %s33, %s45
      %s225 = ssub.s32 %s34, %s41
      %s226 = sor.u32 %s224, %s225
      %p227 = scmp.eq.s32.totalorder %s226, 0
      %s229 = sadd.s32 %s228, 1
      %s230 = scalar_select %p227, %s228, %s229
      %p233 = pneg %p227
      %p234 = scmp.eq.s32.totalorder %s26, 3
      %p235 = por %p233, %p234
      %p236 = scmp.ne.s32.totalorder %s228, %s231
      %p237 = scmp.eq.s32.totalorder %s26, 0
      %p238 = por %p236, %p237
      %p239 = scmp.ne.s32.totalorder %s228, %s231
      %p240 = scmp.eq.s32.totalorder %s31, 3
      %p241 = por %p239, %p240
      %p242 = scmp.ne.s32.totalorder %s231, %s232
      %p243 = scmp.eq.s32.totalorder %s31, 0
      %p244 = por %p242, %p243
      %p245 = scmp.ne.s32.totalorder %s231, %s232
      %p246 = scmp.eq.s32.totalorder %s32, 3
      %p247 = por %p245, %p246
      %p249 = scmp.ne.s32.totalorder %s232, %s248
      %p250 = scmp.eq.s32.totalorder %s32, 0
      %p251 = por %p249, %p250
      %p252 = scmp.le.s32.totalorder 1, %s26
      %p253 = scmp.lt.s32.totalorder %s26, 5
      %p254 = pnand %p252, %p253
      %p255 = pneg %p254
      // Predicated region
      $region9: #{tpu_custom_call.1} parent=5 // pred_check
        _
      $region10: #{tpu_custom_call.1} parent=5 // pred_check_branch
        %257 = sbr.rel (%p254) target = $region12
      $region11: #{tpu_custom_call.1} parent=5 // pred_region
        %s258 = ssub.s32 %s26, 1
        // Predicated region
        $region13: #{tpu_custom_call.1} parent=11 // pred_check
          %p259 = pneg %p85
        $region14: #{tpu_custom_call.1} parent=11 // pred_check_branch
          %261 = sbr.rel (%p259) target = $region16
        $region15: #{tpu_custom_call.1} parent=11 // pred_region
          %263 = vsyncadd [#allocation10], 0
          %s264 = sshll.u32 %s1, 4
          %s265 = int_to_ptr.hbm [resolvable:$true] %s264
          %s266 = sshll.u32 [#allocation9], 4
          %s267 = int_to_ptr.vmem [resolvable:$true] %s266
          %272 = dma.hbm_to_vmem [thread:$0]  %s265, 512, %s267, [#allocation10], 128, 128, 8
        $region16: #{tpu_custom_call.1} parent=11 // pred_fallthru
          _
        // Predicated region
        $region17: #{tpu_custom_call.1} parent=11 // pred_check
          %p273 = pneg %p106
        $region18: #{tpu_custom_call.1} parent=11 // pred_check_branch
          %275 = sbr.rel (%p273) target = $region20
        $region19: #{tpu_custom_call.1} parent=11 // pred_region
          %277 = vsyncadd [#allocation10], 0
          %s278 = sshll.u32 %s2, 4
          %s279 = int_to_ptr.hbm [resolvable:$true] %s278
          %s280 = sshll.u32 [#allocation11], 4
          %s281 = int_to_ptr.vmem [resolvable:$true] %s280
          %286 = dma.hbm_to_vmem [thread:$0]  %s279, 512, %s281, [#allocation10], 128, 128, 8
        $region20: #{tpu_custom_call.1} parent=11 // pred_fallthru
          _
        // Predicated region
        $region21: #{tpu_custom_call.1} parent=11 // pred_check
          %p287 = pneg %p127
        $region22: #{tpu_custom_call.1} parent=11 // pred_check_branch
          %289 = sbr.rel (%p287) target = $region24
        $region23: #{tpu_custom_call.1} parent=11 // pred_region
          %291 = vsyncadd [#allocation13], 0
          %s292 = sshll.u32 %s3, 4
          %s293 = int_to_ptr.hbm [resolvable:$true] %s292
          %s294 = sshll.u32 [#allocation12], 4
          %s295 = int_to_ptr.vmem [resolvable:$true] %s294
          %300 = dma.hbm_to_vmem [thread:$0]  %s293, 512, %s295, [#allocation13], 128, 128, 8
        $region24: #{tpu_custom_call.1} parent=11 // pred_fallthru
          _
        // Predicated region
        $region25: #{tpu_custom_call.1} parent=11 // pred_check
          %p301 = pneg %p148
        $region26: #{tpu_custom_call.1} parent=11 // pred_check_branch
          %303 = sbr.rel (%p301) target = $region28
        $region27: #{tpu_custom_call.1} parent=11 // pred_region
          %305 = vsyncadd [#allocation13], 0
          %s306 = sshll.u32 %s4, 4
          %s307 = int_to_ptr.hbm [resolvable:$true] %s306
          %s308 = sshll.u32 [#allocation14], 4
          %s309 = int_to_ptr.vmem [resolvable:$true] %s308
          %314 = dma.hbm_to_vmem [thread:$0]  %s307, 512, %s309, [#allocation13], 128, 128, 8
        $region28: #{tpu_custom_call.1} parent=11 // pred_fallthru
          _
        // Predicated region
        $region29: #{tpu_custom_call.1} parent=11 // pred_check
          %p315 = pneg %p169
        $region30: #{tpu_custom_call.1} parent=11 // pred_check_branch
          %317 = sbr.rel (%p315) target = $region32
        $region31: #{tpu_custom_call.1} parent=11 // pred_region
          _
        $region32: #{tpu_custom_call.1} parent=11 // pred_fallthru
          _
        // Predicated region
        $region33: #{tpu_custom_call.1} parent=11 // pred_check
          %p318 = pneg %p216
        $region34: #{tpu_custom_call.1} parent=11 // pred_check_branch
          %320 = sbr.rel (%p318) target = $region36
        $region35: #{tpu_custom_call.1} parent=11 // pred_region
          %322 = vsyncadd [#allocation8], 0
          %s324 = sshll.u32 %s7, 4
          %s325 = int_to_ptr.vmem [resolvable:$true] %s324
          %327 = dma.vmem_to_smem %s325, 16, [#allocation17], [#allocation8]
        $region36: #{tpu_custom_call.1} parent=11 // pred_fallthru
          _
      $region12: #{tpu_custom_call.1} parent=5 // pred_fallthru
        _
      %p328 = scmp.lt.s32.totalorder %s26, 4
      // Predicated region
      $region37: #{tpu_custom_call.1} parent=5 // pred_check
        %p329 = pneg %p328
      $region38: #{tpu_custom_call.1} parent=5 // pred_check_branch
        %331 = sbr.rel (%p329) target = $region40
      $region39: #{tpu_custom_call.1} parent=5 // pred_region
        // Predicated region
        $region41: #{tpu_custom_call.1} parent=39 // pred_check
          %p332 = pneg %p58
        $region42: #{tpu_custom_call.1} parent=39 // pred_check_branch
          %334 = sbr.rel (%p332) target = $region44
        $region43: #{tpu_custom_call.1} parent=39 // pred_region
          %s335 = sand.u32 %s48, 1
          %s336 = scalar_lea.sflag [#allocation6], %s335
          %s337 = sand.u32 %s48, 1
          %s338 = smul.addr %s337, 16
          %s339 = scalar_lea.vmem [#allocation5], %s338
          %341 = vsyncadd %s336, 0
          %s342 = smul.addr %s33, 2
          %s343 = smul.addr %s342, 8
          %s344 = scalar_lea.hbm %s0, %s343
          %s345 = sshll.u32 %s344, 4
          %s346 = int_to_ptr.hbm [resolvable:$true] %s345
          %s347 = sshll.u32 %s339, 4
          %s348 = int_to_ptr.vmem [resolvable:$true] %s347
          %353 = dma.hbm_to_vmem [thread:$0]  %s346, 256, %s348, %s336, 128, 128, 8
        $region44: #{tpu_custom_call.1} parent=39 // pred_fallthru
          _
        // Predicated region
        $region45: #{tpu_custom_call.1} parent=39 // pred_check
          %p354 = pneg %p189
        $region46: #{tpu_custom_call.1} parent=39 // pred_check_branch
          %356 = sbr.rel (%p354) target = $region48
        $region47: #{tpu_custom_call.1} parent=39 // pred_region
          %s357 = sand.u32 %s179, 1
          %s358 = scalar_lea.sflag [#allocation16], %s357
          %s359 = sand.u32 %s179, 1
          %s360 = smul.addr %s359, 32
          %s361 = scalar_lea.vmem [#allocation15], %s360
          %363 = vsyncadd %s358, 0
          %s364 = smul.addr %s34, 8
          %s365 = scalar_lea.hbm %s6, %s364
          %s366 = sshll.u32 %s365, 4
          %s367 = int_to_ptr.hbm [resolvable:$true] %s366
          %s368 = sshll.u32 %s361, 4
          %s369 = int_to_ptr.vmem [resolvable:$true] %s368
          %374 = dma.hbm_to_vmem [thread:$0]  %s367, 512, %s369, %s358, 256, 128, 8
        $region48: #{tpu_custom_call.1} parent=39 // pred_fallthru
          _
      $region40: #{tpu_custom_call.1} parent=5 // pred_fallthru
        _
      %p375 = scmp.le.s32.totalorder 1, %s26
      %p376 = scmp.lt.s32.totalorder %s26, 5
      %p377 = pnand %p375, %p376
      %p378 = pneg %p377
      // Predicated region
      $region49: #{tpu_custom_call.1} parent=5 // pred_check
        _
      $region50: #{tpu_custom_call.1} parent=5 // pred_check_branch
        %380 = sbr.rel (%p377) target = $region52
      $region51: #{tpu_custom_call.1} parent=5 // pred_region
        %s381 = ssub.s32 %s26, 1
        %s382 = sand.u32 %s51, 1
        %s383 = scalar_lea.sflag [#allocation6], %s382
        %s384 = sand.u32 %s51, 1
        %s385 = smul.addr %s384, 16
        %s386 = scalar_lea.vmem [#allocation5], %s385
        // Predicated region
        $region53: #{tpu_custom_call.1} parent=51 // pred_check
          %p387 = pneg %p64
        $region54: #{tpu_custom_call.1} parent=51 // pred_check_branch
          %389 = sbr.rel (%p387) target = $region56
        $region55: #{tpu_custom_call.1} parent=51 // pred_region
          %391 = dma.done %s383, 256
        $region56: #{tpu_custom_call.1} parent=51 // pred_fallthru
          _
        // Predicated region
        $region57: #{tpu_custom_call.1} parent=51 // pred_check
          %p392 = pneg %p85
        $region58: #{tpu_custom_call.1} parent=51 // pred_check_branch
          %394 = sbr.rel (%p392) target = $region60
        $region59: #{tpu_custom_call.1} parent=51 // pred_region
          %396 = dma.done [#allocation10], 512
        $region60: #{tpu_custom_call.1} parent=51 // pred_fallthru
          _
        // Predicated region
        $region61: #{tpu_custom_call.1} parent=51 // pred_check
          %p397 = pneg %p106
        $region62: #{tpu_custom_call.1} parent=51 // pred_check_branch
          %399 = sbr.rel (%p397) target = $region64
        $region63: #{tpu_custom_call.1} parent=51 // pred_region
          %401 = dma.done [#allocation10], 512
        $region64: #{tpu_custom_call.1} parent=51 // pred_fallthru
          _
        // Predicated region
        $region65: #{tpu_custom_call.1} parent=51 // pred_check
          %p402 = pneg %p127
        $region66: #{tpu_custom_call.1} parent=51 // pred_check_branch
          %404 = sbr.rel (%p402) target = $region68
        $region67: #{tpu_custom_call.1} parent=51 // pred_region
          %406 = dma.done [#allocation13], 512
        $region68: #{tpu_custom_call.1} parent=51 // pred_fallthru
          _
        // Predicated region
        $region69: #{tpu_custom_call.1} parent=51 // pred_check
          %p407 = pneg %p148
        $region70: #{tpu_custom_call.1} parent=51 // pred_check_branch
          %409 = sbr.rel (%p407) target = $region72
        $region71: #{tpu_custom_call.1} parent=51 // pred_region
          %411 = dma.done [#allocation13], 512
        $region72: #{tpu_custom_call.1} parent=51 // pred_fallthru
          _
        %s412 = sand.u32 %s182, 1
        %s413 = scalar_lea.sflag [#allocation16], %s412
        %s414 = sand.u32 %s182, 1
        %s415 = smul.addr %s414, 32
        %s416 = scalar_lea.vmem [#allocation15], %s415
        // Predicated region
        $region73: #{tpu_custom_call.1} parent=51 // pred_check
          %p417 = pneg %p195
        $region74: #{tpu_custom_call.1} parent=51 // pred_check_branch
          %419 = sbr.rel (%p417) target = $region76
        $region75: #{tpu_custom_call.1} parent=51 // pred_region
          %421 = dma.done %s413, 512
        $region76: #{tpu_custom_call.1} parent=51 // pred_fallthru
          _
        // Predicated region
        $region77: #{tpu_custom_call.1} parent=51 // pred_check
          %p422 = pneg %p216
        $region78: #{tpu_custom_call.1} parent=51 // pred_check_branch
          %424 = sbr.rel (%p422) target = $region80
        $region79: #{tpu_custom_call.1} parent=51 // pred_region
          %426 = dma.done [#allocation8], 16
        $region80: #{tpu_custom_call.1} parent=51 // pred_fallthru
          _
        %427 = sfence
        %s428 = sand.u32 %s51, 1
        %s429 = scalar_lea.sflag [#allocation6], %s428
        %s430 = sand.u32 %s51, 1
        %s431 = smul.addr %s430, 16
        %s432 = scalar_lea.vmem [#allocation5], %s431
        %p433 = pneg %p64
        %p434 = pneg %p61
        %p435 = pneg %p85
        %p436 = pneg %p82
        %p437 = pneg %p106
        %p438 = pneg %p103
        %p439 = pneg %p127
        %p440 = pneg %p124
        %p441 = pneg %p148
        %p442 = pneg %p145
        %p443 = pneg %p169
        %p444 = pneg %p166
        %s445 = sand.u32 %s182, 1
        %s446 = scalar_lea.sflag [#allocation16], %s445
        %s447 = sand.u32 %s182, 1
        %s448 = smul.addr %s447, 32
        %s449 = scalar_lea.vmem [#allocation15], %s448
        %p450 = pneg %p195
        %p451 = pneg %p192
        %p452 = pneg %p216
        %p453 = pneg %p213
        %p454 = pneg %p244
        %p455 = pneg %p241
        %s456 = sand.u32 %s231, 1
        %s457 = scalar_lea.sflag [#allocation7], %s456
        %s458 = sand.u32 %s231, 1
        %s459 = smul.addr %s458, 8
        %s460 = scalar_lea.vmem [#allocation18], %s459
        %p461 = scmp.eq.s32.totalorder %s36, 0
        // Predicated region
        $region81: #{tpu_custom_call.1} parent=51 // pred_check
          %p462 = pneg %p461
        $region82: #{tpu_custom_call.1} parent=51 // pred_check_branch
          %464 = sbr.rel (%p462) target = $region84
        $region83: #{tpu_custom_call.1} parent=51 // pred_region
          %v465 = vld [vmem:[%s386] sm:$0xff]
          %v466 = vld [vmem:[%s386 + $0x8] sm:$0xff]
          %v467 = vld [vmem:[#allocation11] sm:$0xff]
          %v468 = vld [vmem:[#allocation11 + $0x8] sm:$0xff]
          %v469 = vld [vmem:[#allocation11 + $0x10] sm:$0xff]
          %v470 = vld [vmem:[#allocation11 + $0x18] sm:$0xff]
          %vm471 = vcmask 261120
          %v473 = vsel %vm471, %v465, 0
          %v476 = vsel %vm471, %v466, 0
          %478 = vmatpush.msra.mxu0 0.0
          %479 = vmatpush.msra.mxu0 0.0
          %480 = vmatpush.msra.mxu0 0.0
          %481 = vmatpush.msra.mxu0 0.0
          %482 = vmatpush.msra.mxu0 0.0
          %483 = vmatpush.msra.mxu0 0.0
          %484 = vmatpush.msra.mxu0 0.0
          %485 = vmatpush.msra.mxu0 0.0
          %486 = vmatpush.msra.mxu0 0.0
          %487 = vmatpush.msra.mxu0 0.0
          %488 = vmatpush.msra.mxu0 0.0
          %489 = vmatpush.msra.mxu0 0.0
          %490 = vmatpush.msra.mxu0 %v470
          %491 = vmatpush.msra.mxu0 %v469
          %492 = vmatpush.msra.mxu0 %v468
          %493 = vmatpush.msra.mxu0 %v467
          %494 = vmatmul.f32.gmra.mxu0 %v473
          %v495 = vpop.f32.mrf.mxu0
          %v496 = vadd.f32 0.0, %v495
          %497 = vmatmul.f32.gmra.mxu0 %v476
          %v498 = vpop.f32.mrf.mxu0
          %v499 = vadd.f32 0.0, %v498
          %500 = vdwg.mxu0
          %501 = vst.msk [vmem:[#allocation2] sm:$0xff] %vm471, %v496
          %502 = vst.msk [vmem:[#allocation2 + $0x8] sm:$0xff] %vm471, %v499
          %v503 = vld [vmem:[#allocation12] sm:$0xff]
          %v504 = vld [vmem:[#allocation12 + $0x8] sm:$0xff]
          %v505 = vld [vmem:[#allocation12 + $0x10] sm:$0xff]
          %v506 = vld [vmem:[#allocation12 + $0x18] sm:$0xff]
          %507 = vmatpush.msra.mxu0 0.0
          %508 = vmatpush.msra.mxu0 0.0
          %509 = vmatpush.msra.mxu0 0.0
          %510 = vmatpush.msra.mxu0 0.0
          %511 = vmatpush.msra.mxu0 0.0
          %512 = vmatpush.msra.mxu0 0.0
          %513 = vmatpush.msra.mxu0 0.0
          %514 = vmatpush.msra.mxu0 0.0
          %515 = vmatpush.msra.mxu0 0.0
          %516 = vmatpush.msra.mxu0 0.0
          %517 = vmatpush.msra.mxu0 0.0
          %518 = vmatpush.msra.mxu0 0.0
          %519 = vmatpush.msra.mxu0 %v506
          %520 = vmatpush.msra.mxu0 %v505
          %521 = vmatpush.msra.mxu0 %v504
          %522 = vmatpush.msra.mxu0 %v503
          %523 = vmatmul.f32.gmra.mxu0 %v473
          %v524 = vpop.f32.mrf.mxu0
          %v525 = vadd.f32 0.0, %v524
          %526 = vmatmul.f32.gmra.mxu0 %v476
          %v527 = vpop.f32.mrf.mxu0
          %v528 = vadd.f32 0.0, %v527
          %529 = vdwg.mxu0
          %530 = vst.msk [vmem:[#allocation3] sm:$0xff] %vm471, %v525
          %531 = vst.msk [vmem:[#allocation3 + $0x8] sm:$0xff] %vm471, %v528
        $region84: #{tpu_custom_call.1} parent=51 // pred_fallthru
          _
        %s532 = smul.u32 %s36, 8
        %s533 = scalar_lea.vmem %s386, %s532 [#allocation5]
        %v534 = vld [vmem:[%s533] sm:$0xff]
        %v535 = vld [vmem:[#allocation9] sm:$0xff]
        %v536 = vld [vmem:[#allocation9 + $0x8] sm:$0xff]
        %v537 = vld [vmem:[#allocation9 + $0x10] sm:$0xff]
        %v538 = vld [vmem:[#allocation9 + $0x18] sm:$0xff]
        %vm539 = vcmask 261120
        %v541 = vsel %vm539, %v534, 0
        %543 = vmatpush.msra.mxu0 0.0
        %544 = vmatpush.msra.mxu0 0.0
        %545 = vmatpush.msra.mxu0 0.0
        %546 = vmatpush.msra.mxu0 0.0
        %547 = vmatpush.msra.mxu0 0.0
        %548 = vmatpush.msra.mxu0 0.0
        %549 = vmatpush.msra.mxu0 0.0
        %550 = vmatpush.msra.mxu0 0.0
        %551 = vmatpush.msra.mxu0 0.0
        %552 = vmatpush.msra.mxu0 0.0
        %553 = vmatpush.msra.mxu0 0.0
        %554 = vmatpush.msra.mxu0 0.0
        %555 = vmatpush.msra.mxu0 %v538
        %556 = vmatpush.msra.mxu0 %v537
        %557 = vmatpush.msra.mxu0 %v536
        %558 = vmatpush.msra.mxu0 %v535
        %559 = vmatmul.f32.gmra.mxu0 %v541
        %v560 = vpop.f32.mrf.mxu0
        %v561 = vadd.f32 0.0, %v560
        %562 = vdwg.mxu0
        %v563 = vmul.f32 %v561, 0.35355338
        %v564 = vld [vmem:[#allocation2] sm:$0xff]
        %v565 = vld [vmem:[#allocation2 + $0x8] sm:$0xff]
        %v566 = vld [vmem:[#allocation3] sm:$0xff]
        %v567 = vld [vmem:[#allocation3 + $0x8] sm:$0xff]
        %vm568 = vcmask 64512
        %v570 = vsel %vm568, %v563, 0
        %v573 = vsel %vm568, %v564, 0
        %v576 = vsel %vm568, %v565, 0
        %578 = vmatpush.xpose.msra.mxu0 0.0
        %579 = vmatpush.xpose.msra.mxu0 0.0
        %580 = vmatpush.xpose.msra.mxu0 0.0
        %581 = vmatpush.xpose.msra.mxu0 0.0
        %582 = vmatpush.xpose.msra.mxu0 0.0
        %583 = vmatpush.xpose.msra.mxu0 0.0
        %584 = vmatpush.xpose.msra.mxu0 0.0
        %585 = vmatpush.xpose.msra.mxu0 0.0
        %586 = vmatpush.xpose.msra.mxu0 0.0
        %587 = vmatpush.xpose.msra.mxu0 0.0
        %588 = vmatpush.xpose.msra.mxu0 0.0
        %589 = vmatpush.xpose.msra.mxu0 0.0
        %590 = vmatpush.xpose.msra.mxu0 0.0
        %591 = vmatpush.xpose.msra.mxu0 0.0
        %592 = vmatpush.xpose.msra.mxu0 %v576
        %593 = vmatpush.xpose.msra.mxu0 %v573
        %594 = vmatmul.f32.gmra.mxu0 %v570
        %v595 = vpop.f32.mrf.mxu0
        %v596 = vadd.f32 0.0, %v595
        %597 = vdwg.mxu0
        %vm598 = vcmask 130048
        %v599 = vsel %vm598, %v596, -inf
        %600 = vmax.xlane.f32.xlu0 %v599
        %v601 = vpop.xlane.xlu0 %600
        %v602 = vsub.f32 %v596, %v601
        %v603 = vmul.f32 %v602, 1.442695
        %v604 = vpow.pop %v603
        %v605 = vsel %vm598, %v604, 0.0
        %606 = vadd.xlane.f32.xlu0 %v605
        %v607 = vpop.xlane.xlu0 %606
        %v608 = vrcp.pop %v607
        %v609 = vmul.f32 %v604, %v608
        %s610 = sld [smem:[#allocation17]]
        %s611 = ssub.f32 1.0, %s610
        %v612 = vstv %s611
        %v613 = vmul.f32 %v612, %v609
        %v614 = vld [vmem:[%s416] sm:$0xff]
        %v615 = vstv %s610
        %v616 = vmul.f32 %v615, %v614
        %v617 = vadd.f32 %v613, %v616
        %v618 = vsel %vm598, %v617, 0.0
        %619 = vadd.xlane.f32.xlu0 %v618
        %v620 = vpop.xlane.xlu0 %619
        %v621 = vrcp.pop %v620
        %v622 = vmul.f32 %v617, %v621
        %v624 = vsel %vm598, %v622, 0
        %626 = vmatpush.msra.mxu0 0.0
        %627 = vmatpush.msra.mxu0 0.0
        %628 = vmatpush.msra.mxu0 0.0
        %629 = vmatpush.msra.mxu0 0.0
        %630 = vmatpush.msra.mxu0 0.0
        %631 = vmatpush.msra.mxu0 0.0
        %632 = vmatpush.msra.mxu0 0.0
        %633 = vmatpush.msra.mxu0 0.0
        %634 = vmatpush.msra.mxu0 0.0
        %635 = vmatpush.msra.mxu0 0.0
        %636 = vmatpush.msra.mxu0 0.0
        %637 = vmatpush.msra.mxu0 0.0
        %638 = vmatpush.msra.mxu0 0.0
        %639 = vmatpush.msra.mxu0 0.0
        %640 = vmatpush.msra.mxu0 %v567
        %641 = vmatpush.msra.mxu0 %v566
        %642 = vmatmul.f32.gmra.mxu0 %v624
        %v643 = vpop.f32.mrf.mxu0
        %v644 = vadd.f32 0.0, %v643
        %645 = vdwg.mxu0
        %646 = vst.msk [vmem:[#allocation4] sm:$0xff] %vm568, %v644
        %647 = vrot.lane.b32.xlu0 %v563, 120
        %v648 = vpop.permute.xlu0 %647
        %649 = vrot.lane.b32.xlu0 %v564, 120
        %v650 = vpop.permute.xlu0 %649
        %651 = vrot.lane.b32.xlu0 %v565, 120
        %v652 = vpop.permute.xlu0 %651
        %v653 = vsel %vm568, %v648, 0
        %v655 = vsel %vm568, %v650, 0
        %v657 = vsel %vm568, %v652, 0
        %659 = vmatpush.xpose.msra.mxu0 0.0
        %660 = vmatpush.xpose.msra.mxu0 0.0
        %661 = vmatpush.xpose.msra.mxu0 0.0
        %662 = vmatpush.xpose.msra.mxu0 0.0
        %663 = vmatpush.xpose.msra.mxu0 0.0
        %664 = vmatpush.xpose.msra.mxu0 0.0
        %665 = vmatpush.xpose.msra.mxu0 0.0
        %666 = vmatpush.xpose.msra.mxu0 0.0
        %667 = vmatpush.xpose.msra.mxu0 0.0
        %668 = vmatpush.xpose.msra.mxu0 0.0
        %669 = vmatpush.xpose.msra.mxu0 0.0
        %670 = vmatpush.xpose.msra.mxu0 0.0
        %671 = vmatpush.xpose.msra.mxu0 0.0
        %672 = vmatpush.xpose.msra.mxu0 0.0
        %673 = vmatpush.xpose.msra.mxu0 %v657
        %674 = vmatpush.xpose.msra.mxu0 %v655
        %675 = vmatmul.f32.gmra.mxu0 %v653
        %v676 = vpop.f32.mrf.mxu0
        %v677 = vadd.f32 0.0, %v676
        %678 = vdwg.mxu0
        %v679 = vsel %vm598, %v677, -inf
        %680 = vmax.xlane.f32.xlu0 %v679
        %v681 = vpop.xlane.xlu0 %680
        %v682 = vsub.f32 %v677, %v681
        %v683 = vmul.f32 %v682, 1.442695
        %v684 = vpow.pop %v683
        %v685 = vsel %vm598, %v684, 0.0
        %686 = vadd.xlane.f32.xlu0 %v685
        %v687 = vpop.xlane.xlu0 %686
        %v688 = vrcp.pop %v687
        %v689 = vmul.f32 %v684, %v688
        %s690 = sld [smem:[#allocation17 + $0x1]]
        %s691 = ssub.f32 1.0, %s690
        %v692 = vstv %s691
        %v693 = vmul.f32 %v692, %v689
        %s694 = scalar_lea.vmem %s416, 8 [#allocation15]
        %v695 = vld [vmem:[%s694] sm:$0xff]
        %v696 = vstv %s690
        %v697 = vmul.f32 %v696, %v695
        %v698 = vadd.f32 %v693, %v697
        %v699 = vsel %vm598, %v698, 0.0
        %700 = vadd.xlane.f32.xlu0 %v699
        %v701 = vpop.xlane.xlu0 %700
        %v702 = vrcp.pop %v701
        %v703 = vmul.f32 %v698, %v702
        %706 = vrot.lane.b32.xlu0 %v566, 120
        %v707 = vpop.permute.xlu0 %706
        %708 = vrot.lane.b32.xlu0 %v567, 120
        %v709 = vpop.permute.xlu0 %708
        %v713 = vsel %vm598, %v703, 0
        %715 = vmatpush.msra.mxu0 0.0
        %716 = vmatpush.msra.mxu0 0.0
        %717 = vmatpush.msra.mxu0 0.0
        %718 = vmatpush.msra.mxu0 0.0
        %719 = vmatpush.msra.mxu0 0.0
        %720 = vmatpush.msra.mxu0 0.0
        %721 = vmatpush.msra.mxu0 0.0
        %722 = vmatpush.msra.mxu0 0.0
        %723 = vmatpush.msra.mxu0 0.0
        %724 = vmatpush.msra.mxu0 0.0
        %725 = vmatpush.msra.mxu0 0.0
        %726 = vmatpush.msra.mxu0 0.0
        %727 = vmatpush.msra.mxu0 0.0
        %728 = vmatpush.msra.mxu0 0.0
        %729 = vmatpush.msra.mxu0 %v709
        %730 = vmatpush.msra.mxu0 %v707
        %731 = vmatmul.f32.gmra.mxu0 %v713
        %v732 = vpop.f32.mrf.mxu0
        %v733 = vadd.f32 0.0, %v732
        %734 = vdwg.mxu0
        %736 = vrot.lane.b32.xlu0 %v733, 8
        %v737 = vpop.permute.xlu0 %736
        %vm739 = vcmask 130112
        %740 = vst.msk [vmem:[#allocation4] sm:$0xff] %vm739, %v737
        %741 = vrot.lane.b32.xlu0 %v563, 112
        %v742 = vpop.permute.xlu0 %741
        %743 = vrot.lane.b32.xlu0 %v564, 112
        %v744 = vpop.permute.xlu0 %743
        %745 = vrot.lane.b32.xlu0 %v565, 112
        %v746 = vpop.permute.xlu0 %745
        %v747 = vsel %vm568, %v742, 0
        %v749 = vsel %vm568, %v744, 0
        %v751 = vsel %vm568, %v746, 0
        %753 = vmatpush.xpose.msra.mxu0 0.0
        %754 = vmatpush.xpose.msra.mxu0 0.0
        %755 = vmatpush.xpose.msra.mxu0 0.0
        %756 = vmatpush.xpose.msra.mxu0 0.0
        %757 = vmatpush.xpose.msra.mxu0 0.0
        %758 = vmatpush.xpose.msra.mxu0 0.0
        %759 = vmatpush.xpose.msra.mxu0 0.0
        %760 = vmatpush.xpose.msra.mxu0 0.0
        %761 = vmatpush.xpose.msra.mxu0 0.0
        %762 = vmatpush.xpose.msra.mxu0 0.0
        %763 = vmatpush.xpose.msra.mxu0 0.0
        %764 = vmatpush.xpose.msra.mxu0 0.0
        %765 = vmatpush.xpose.msra.mxu0 0.0
        %766 = vmatpush.xpose.msra.mxu0 0.0
        %767 = vmatpush.xpose.msra.mxu0 %v751
        %768 = vmatpush.xpose.msra.mxu0 %v749
        %769 = vmatmul.f32.gmra.mxu0 %v747
        %v770 = vpop.f32.mrf.mxu0
        %v771 = vadd.f32 0.0, %v770
        %772 = vdwg.mxu0
        %v773 = vsel %vm598, %v771, -inf
        %774 = vmax.xlane.f32.xlu0 %v773
        %v775 = vpop.xlane.xlu0 %774
        %v776 = vsub.f32 %v771, %v775
        %v777 = vmul.f32 %v776, 1.442695
        %v778 = vpow.pop %v777
        %v779 = vsel %vm598, %v778, 0.0
        %780 = vadd.xlane.f32.xlu0 %v779
        %v781 = vpop.xlane.xlu0 %780
        %v782 = vrcp.pop %v781
        %v783 = vmul.f32 %v778, %v782
        %s784 = sld [smem:[#allocation17 + $0x2]]
        %s785 = ssub.f32 1.0, %s784
        %v786 = vstv %s785
        %v787 = vmul.f32 %v786, %v783
        %s788 = scalar_lea.vmem %s416, 16 [#allocation15]
        %v789 = vld [vmem:[%s788] sm:$0xff]
        %v790 = vstv %s784
        %v791 = vmul.f32 %v790, %v789
        %v792 = vadd.f32 %v787, %v791
        %v793 = vsel %vm598, %v792, 0.0
        %794 = vadd.xlane.f32.xlu0 %v793
        %v795 = vpop.xlane.xlu0 %794
        %v796 = vrcp.pop %v795
        %v797 = vmul.f32 %v792, %v796
        %798 = vrot.lane.b32.xlu0 %v566, 112
        %v799 = vpop.permute.xlu0 %798
        %800 = vrot.lane.b32.xlu0 %v567, 112
        %v801 = vpop.permute.xlu0 %800
        %v805 = vsel %vm598, %v797, 0
        %807 = vmatpush.msra.mxu0 0.0
        %808 = vmatpush.msra.mxu0 0.0
        %809 = vmatpush.msra.mxu0 0.0
        %810 = vmatpush.msra.mxu0 0.0
        %811 = vmatpush.msra.mxu0 0.0
        %812 = vmatpush.msra.mxu0 0.0
        %813 = vmatpush.msra.mxu0 0.0
        %814 = vmatpush.msra.mxu0 0.0
        %815 = vmatpush.msra.mxu0 0.0
        %816 = vmatpush.msra.mxu0 0.0
        %817 = vmatpush.msra.mxu0 0.0
        %818 = vmatpush.msra.mxu0 0.0
        %819 = vmatpush.msra.mxu0 0.0
        %820 = vmatpush.msra.mxu0 0.0
        %821 = vmatpush.msra.mxu0 %v801
        %822 = vmatpush.msra.mxu0 %v799
        %823 = vmatmul.f32.gmra.mxu0 %v805
        %v824 = vpop.f32.mrf.mxu0
        %v825 = vadd.f32 0.0, %v824
        %826 = vdwg.mxu0
        %828 = vrot.lane.b32.xlu0 %v825, 16
        %v829 = vpop.permute.xlu0 %828
        %vm831 = vcmask 195712
        %832 = vst.msk [vmem:[#allocation4] sm:$0xff] %vm831, %v829
        %833 = vrot.lane.b32.xlu0 %v563, 104
        %v834 = vpop.permute.xlu0 %833
        %835 = vrot.lane.b32.xlu0 %v564, 104
        %v836 = vpop.permute.xlu0 %835
        %837 = vrot.lane.b32.xlu0 %v565, 104
        %v838 = vpop.permute.xlu0 %837
        %v839 = vsel %vm568, %v834, 0
        %v841 = vsel %vm568, %v836, 0
        %v843 = vsel %vm568, %v838, 0
        %845 = vmatpush.xpose.msra.mxu0 0.0
        %846 = vmatpush.xpose.msra.mxu0 0.0
        %847 = vmatpush.xpose.msra.mxu0 0.0
        %848 = vmatpush.xpose.msra.mxu0 0.0
        %849 = vmatpush.xpose.msra.mxu0 0.0
        %850 = vmatpush.xpose.msra.mxu0 0.0
        %851 = vmatpush.xpose.msra.mxu0 0.0
        %852 = vmatpush.xpose.msra.mxu0 0.0
        %853 = vmatpush.xpose.msra.mxu0 0.0
        %854 = vmatpush.xpose.msra.mxu0 0.0
        %855 = vmatpush.xpose.msra.mxu0 0.0
        %856 = vmatpush.xpose.msra.mxu0 0.0
        %857 = vmatpush.xpose.msra.mxu0 0.0
        %858 = vmatpush.xpose.msra.mxu0 0.0
        %859 = vmatpush.xpose.msra.mxu0 %v843
        %860 = vmatpush.xpose.msra.mxu0 %v841
        %861 = vmatmul.f32.gmra.mxu0 %v839
        %v862 = vpop.f32.mrf.mxu0
        %v863 = vadd.f32 0.0, %v862
        %864 = vdwg.mxu0
        %v865 = vsel %vm598, %v863, -inf
        %866 = vmax.xlane.f32.xlu0 %v865
        %v867 = vpop.xlane.xlu0 %866
        %v868 = vsub.f32 %v863, %v867
        %v869 = vmul.f32 %v868, 1.442695
        %v870 = vpow.pop %v869
        %v871 = vsel %vm598, %v870, 0.0
        %872 = vadd.xlane.f32.xlu0 %v871
        %v873 = vpop.xlane.xlu0 %872
        %v874 = vrcp.pop %v873
        %v875 = vmul.f32 %v870, %v874
        %s876 = sld [smem:[#allocation17 + $0x3]]
        %s877 = ssub.f32 1.0, %s876
        %v878 = vstv %s877
        %v879 = vmul.f32 %v878, %v875
        %s880 = scalar_lea.vmem %s416, 24 [#allocation15]
        %v881 = vld [vmem:[%s880] sm:$0xff]
        %v882 = vstv %s876
        %v883 = vmul.f32 %v882, %v881
        %v884 = vadd.f32 %v879, %v883
        %v885 = vsel %vm598, %v884, 0.0
        %886 = vadd.xlane.f32.xlu0 %v885
        %v887 = vpop.xlane.xlu0 %886
        %v888 = vrcp.pop %v887
        %v889 = vmul.f32 %v884, %v888
        %890 = vrot.lane.b32.xlu0 %v566, 104
        %v891 = vpop.permute.xlu0 %890
        %892 = vrot.lane.b32.xlu0 %v567, 104
        %v893 = vpop.permute.xlu0 %892
        %v897 = vsel %vm598, %v889, 0
        %899 = vmatpush.msra.mxu0 0.0
        %900 = vmatpush.msra.mxu0 0.0
        %901 = vmatpush.msra.mxu0 0.0
        %902 = vmatpush.msra.mxu0 0.0
        %903 = vmatpush.msra.mxu0 0.0
        %904 = vmatpush.msra.mxu0 0.0
        %905 = vmatpush.msra.mxu0 0.0
        %906 = vmatpush.msra.mxu0 0.0
        %907 = vmatpush.msra.mxu0 0.0
        %908 = vmatpush.msra.mxu0 0.0
        %909 = vmatpush.msra.mxu0 0.0
        %910 = vmatpush.msra.mxu0 0.0
        %911 = vmatpush.msra.mxu0 0.0
        %912 = vmatpush.msra.mxu0 0.0
        %913 = vmatpush.msra.mxu0 %v893
        %914 = vmatpush.msra.mxu0 %v891
        %915 = vmatmul.f32.gmra.mxu0 %v897
        %v916 = vpop.f32.mrf.mxu0
        %v917 = vadd.f32 0.0, %v916
        %918 = vdwg.mxu0
        %920 = vrot.lane.b32.xlu0 %v917, 24
        %v921 = vpop.permute.xlu0 %920
        %vm923 = vcmask 261312
        %924 = vst.msk [vmem:[#allocation4] sm:$0xff] %vm923, %v921
        %v925 = vld [vmem:[#allocation4] sm:$0xff]
        %v926 = vld [vmem:[#allocation14] sm:$0xff]
        %v927 = vld [vmem:[#allocation14 + $0x8] sm:$0xff]
        %v928 = vld [vmem:[#allocation14 + $0x10] sm:$0xff]
        %v929 = vld [vmem:[#allocation14 + $0x18] sm:$0xff]
        %v930 = vld [vmem:[%s5] sm:$0x1]
        %v932 = vperm.slane %v930, 0
        %v935 = vsel %vm539, %v925, 0
        %937 = vmatpush.msra.mxu0 0.0
        %938 = vmatpush.msra.mxu0 0.0
        %939 = vmatpush.msra.mxu0 0.0
        %940 = vmatpush.msra.mxu0 0.0
        %941 = vmatpush.msra.mxu0 0.0
        %942 = vmatpush.msra.mxu0 0.0
        %943 = vmatpush.msra.mxu0 0.0
        %944 = vmatpush.msra.mxu0 0.0
        %945 = vmatpush.msra.mxu0 0.0
        %946 = vmatpush.msra.mxu0 0.0
        %947 = vmatpush.msra.mxu0 0.0
        %948 = vmatpush.msra.mxu0 0.0
        %949 = vmatpush.msra.mxu0 %v929
        %950 = vmatpush.msra.mxu0 %v928
        %951 = vmatpush.msra.mxu0 %v927
        %952 = vmatpush.msra.mxu0 %v926
        %953 = vmatmul.f32.gmra.mxu0 %v935
        %v954 = vpop.f32.mrf.mxu0
        %v955 = vadd.f32 %v932, %v954
        %956 = vdwg.mxu0
        %957 = vst.msk [vmem:[%s460] sm:$0xff] %vm539, %v955
        %s958 = sand.u32 %s231, 1
        %s959 = scalar_lea.sflag [#allocation7], %s958
        %s960 = sand.u32 %s231, 1
        %s961 = smul.addr %s960, 8
        %s962 = scalar_lea.vmem [#allocation18], %s961
        // Predicated region
        $region85: #{tpu_custom_call.1} parent=51 // pred_check
          %p963 = pneg %p241
        $region86: #{tpu_custom_call.1} parent=51 // pred_check_branch
          %965 = sbr.rel (%p963) target = $region88
        $region87: #{tpu_custom_call.1} parent=51 // pred_region
          %967 = vsyncadd %s959, 0
          %s968 = smul.addr %s35, 2
          %s969 = sadd.s32 %s36, %s968
          %s970 = smul.addr %s969, 8
          %s971 = scalar_lea.hbm %s8, %s970
          %s973 = sshll.u32 %s962, 4
          %s974 = int_to_ptr.vmem [resolvable:$true] %s973
          %s975 = sshll.u32 %s971, 4
          %s976 = int_to_ptr.hbm [resolvable:$true] %s975
          %978 = dma.vmem_to_hbm [thread:$0]  %s974, 128, %s976, %s959
        $region88: #{tpu_custom_call.1} parent=51 // pred_fallthru
          _
      $region52: #{tpu_custom_call.1} parent=5 // pred_fallthru
        _
      %p979 = scmp.le.s32.totalorder 2, %s26
      // Predicated region
      $region89: #{tpu_custom_call.1} parent=5 // pred_check
        %p980 = pneg %p979
      $region90: #{tpu_custom_call.1} parent=5 // pred_check_branch
        %982 = sbr.rel (%p980) target = $region92
      $region91: #{tpu_custom_call.1} parent=5 // pred_region
        %s983 = ssub.s32 %s26, 2
        // Predicated region
        $region93: #{tpu_custom_call.1} parent=91 // pred_check
          %p984 = pneg %p247
        $region94: #{tpu_custom_call.1} parent=91 // pred_check_branch
          %986 = sbr.rel (%p984) target = $region96
        $region95: #{tpu_custom_call.1} parent=91 // pred_region
          %s987 = sand.u32 %s232, 1
          %s988 = scalar_lea.sflag [#allocation7], %s987
          %s989 = sand.u32 %s232, 1
          %s990 = smul.addr %s989, 8
          %s991 = scalar_lea.vmem [#allocation18], %s990
          %993 = dma.done %s988, 128
        $region96: #{tpu_custom_call.1} parent=91 // pred_fallthru
          _
      $region92: #{tpu_custom_call.1} parent=5 // pred_fallthru
        _
    $region6: #{tpu_custom_call.1} parent=1 // loop_footer
      %s30 = sadd.s32 1, %s26
    $region7: #{tpu_custom_call.1} parent=1 // loop_footer_branch
      %25 = sbr.rel target = $region3
    $region8: #{tpu_custom_call.1} parent=1 // loop_exit
      _
    %994 = vsyncpa [#allocation6], 1
    %s995 = scalar_lea.sflag [#allocation6], 1
    %996 = vsyncpa %s995, 1
    %997 = vsyncpa [#allocation10], 1
    %998 = vsyncpa [#allocation13], 1
    %999 = vsyncpa [#allocation16], 1
    %s1000 = scalar_lea.sflag [#allocation16], 1
    %1001 = vsyncpa %s1000, 1
    %1002 = vsyncpa [#allocation7], 1
    %s1003 = scalar_lea.sflag [#allocation7], 1
    %1004 = vsyncpa %s1003, 1
    %1005 = vsyncpa [#allocation8], 1
    %s1006 = scalar_lea.sflag [#allocation8], 1
    %1007 = vsyncpa %s1006, 1

</llo_original>
